<compile_context>
chip_gen: v6e
topology: v6e:2x2x1
jax: 0.10.0
libtpu: 0.0.40
codegen_flags: <defaults>
</compile_context>

<pallas_src>
import functools

import jax
import jax.numpy as jnp
from jax.experimental import pallas as pl
from jax.experimental.pallas import tpu as pltpu

_BN_EPS = 1e-5
_LANE = 128
_VMEM_BUDGET = 48 * 1024 * 1024      # stay below v7x's 64 MiB physical VMEM


def _round_up(x, m):
    return (x + m - 1) // m * m


def _pad_axis(x, axis, target):
    pad = target - x.shape[axis]
    if pad == 0:
        return x
    widths = [(0, 0)] * x.ndim
    widths[axis] = (0, pad)
    return jnp.pad(x, widths)


def _mosaic_params(vmem_bytes):
    vmem_bytes = int(min(max(vmem_bytes, 4 << 20), 100 << 20))
    return pltpu.CompilerParams(
        dimension_semantics=("parallel",),
        vmem_limit_bytes=vmem_bytes,
    )


# ----------------------------- Pallas kernels ------------------------------


def _matmul_stats_kernel(a_ref, w_ref, y_ref, stats_ref):
    # conv-as-matmul: bf16 MXU inputs, f32 accumulation; y stored bf16 (downstream is
    # memory-bound and re-casts to bf16 for the next MXU pass anyway).
    y = jnp.dot(a_ref[...], w_ref[...], preferred_element_type=jnp.float32)
    y_ref[...] = y.astype(y_ref.dtype)
    # Per-tile partial BatchNorm statistics: one unmasked full-tile (8, cw) store.
    # row 0 = column sums, row 1 = column sums of squares, rows 2..7 = 0.
    stats_ref[...] = jnp.concatenate(
        [jnp.sum(y, axis=0, keepdims=True),
         jnp.sum(y * y, axis=0, keepdims=True),
         jnp.zeros((6, y.shape[1]), jnp.float32)],
        axis=0)


def _affine_kernel(y_ref, scale_ref, shift_ref, o_ref, *, relu):
    # out = y * scale + shift (folded BatchNorm), optional ReLU; bf16 in/out, f32 math.
    out = y_ref[...].astype(jnp.float32) * scale_ref[...] + shift_ref[...]
    if relu:
        out = jnp.maximum(out, 0.0)
    o_ref[...] = out.astype(o_ref.dtype)


def _bn_add_relu_kernel(y_ref, res_ref, scale_ref, shift_ref, rscale_ref,
                        rshift_ref, o_ref):
    # out = relu( bn2(conv2) + bn_s(shortcut) ), both BNs folded to per-channel affine.
    out = y_ref[...].astype(jnp.float32) * scale_ref[...] + shift_ref[...]
    out = out + res_ref[...].astype(jnp.float32) * rscale_ref[...] + rshift_ref[...]
    o_ref[...] = jnp.maximum(out, 0.0).astype(o_ref.dtype)


# ------------------------------ pallas_call glue ----------------------------


def matmul_stats(a, w, *, tm):
    """a: (Mpad, Kpad) bf16, w: (Kpad, Cw) bf16 -> (y bf16 (Mpad, Cw), col_sum, col_sumsq)."""
    mpad, kpad = a.shape
    cw = w.shape[1]
    grid = (mpad // tm,)
    flops = 2 * mpad * kpad * cw
    bytes_accessed = a.size * 2 + w.size * 2 + mpad * cw * 2 + grid[0] * 8 * cw * 4
    vmem = 2 * (tm * kpad * 2 + kpad * cw * 2 + tm * cw * 2 + 8 * cw * 4) + (2 << 20)
    y, stats = pl.pallas_call(
        _matmul_stats_kernel,
        out_shape=(
            jax.ShapeDtypeStruct((mpad, cw), jnp.bfloat16),
            jax.ShapeDtypeStruct((grid[0] * 8, cw), jnp.float32),
        ),
        grid_spec=pltpu.PrefetchScalarGridSpec(
            num_scalar_prefetch=0,
            grid=grid,
            in_specs=[
                pl.BlockSpec((tm, kpad), lambda i: (i, 0)),
                pl.BlockSpec((kpad, cw), lambda i: (0, 0)),   # weight stays resident
            ],
            out_specs=[
                pl.BlockSpec((tm, cw), lambda i: (i, 0)),
                pl.BlockSpec((8, cw), lambda i: (i, 0)),
            ],
        ),
        compiler_params=_mosaic_params(vmem),
        cost_estimate=pl.CostEstimate(
            flops=flops, transcendentals=0, bytes_accessed=bytes_accessed),
    )(a, w)
    stats = stats.reshape(grid[0], 8, cw)
    col_sum = jnp.sum(stats[:, 0, :], axis=0)
    col_sumsq = jnp.sum(stats[:, 1, :], axis=0)
    return y, col_sum, col_sumsq


def affine(y, scale, shift, *, tm, cols, relu):
    """Elementwise y*scale+shift (+ReLU), bf16 out; only the first `cols` columns are read."""
    mpad = y.shape[0]
    grid = (mpad // tm,)
    vmem = 2 * (2 * tm * cols * 2) + 4 * cols * 4 + (2 << 20)
    kern = functools.partial(_affine_kernel, relu=relu)
    return pl.pallas_call(
        kern,
        out_shape=jax.ShapeDtypeStruct((mpad, cols), jnp.bfloat16),
        grid_spec=pltpu.PrefetchScalarGridSpec(
            num_scalar_prefetch=0,
            grid=grid,
            in_specs=[
                pl.BlockSpec((tm, cols), lambda i: (i, 0)),
                pl.BlockSpec((1, cols), lambda i: (0, 0)),
                pl.BlockSpec((1, cols), lambda i: (0, 0)),
            ],
            out_specs=pl.BlockSpec((tm, cols), lambda i: (i, 0)),
        ),
        compiler_params=_mosaic_params(vmem),
        cost_estimate=pl.CostEstimate(
            flops=2 * mpad * cols, transcendentals=0,
            bytes_accessed=mpad * cols * 4),
    )(y, scale, shift)


def bn_add_relu(y, scale, shift, res, rscale, rshift, *, tm, cols, res_col_block):
    """relu(y*scale+shift + res*rscale+rshift); residual columns picked via res_col_block."""
    mpad = y.shape[0]
    grid = (mpad // tm,)
    vmem = 2 * (2 * tm * cols * 2 + tm * cols * 4) + 8 * cols * 4 + (2 << 20)
    return pl.pallas_call(
        _bn_add_relu_kernel,
        out_shape=jax.ShapeDtypeStruct((mpad, cols), jnp.float32),
        grid_spec=pltpu.PrefetchScalarGridSpec(
            num_scalar_prefetch=0,
            grid=grid,
            in_specs=[
                pl.BlockSpec((tm, cols), lambda i: (i, 0)),
                pl.BlockSpec((tm, cols), lambda i, _b=res_col_block: (i, _b)),
                pl.BlockSpec((1, cols), lambda i: (0, 0)),
                pl.BlockSpec((1, cols), lambda i: (0, 0)),
                pl.BlockSpec((1, cols), lambda i: (0, 0)),
                pl.BlockSpec((1, cols), lambda i: (0, 0)),
            ],
            out_specs=pl.BlockSpec((tm, cols), lambda i: (i, 0)),
        ),
        compiler_params=_mosaic_params(vmem),
        cost_estimate=pl.CostEstimate(
            flops=4 * mpad * cols, transcendentals=0,
            bytes_accessed=mpad * cols * (2 + 2 + 4)),
    )(y, res, scale, shift, rscale, rshift)


# ------------------------------- helpers ------------------------------------


def _im2col(x_padded, k, stride):
    # x_padded: (N, Hp, Wp, C) NHWC (bf16), already spatially padded. Plain-JAX glue.
    n, hp, wp, c = x_padded.shape
    ho = (hp - k) // stride + 1
    wo = (wp - k) // stride + 1
    patches = []
    for ki in range(k):
        for kj in range(k):
            patches.append(
                x_padded[:, ki:ki + ho * stride:stride, kj:kj + wo * stride:stride, :])
    patches = jnp.stack(patches, axis=3)                  # (N, Ho, Wo, k*k, C)
    return patches.reshape(n * ho * wo, k * k * c), (n, ho, wo)


def _conv_weight_to_matrix(w_oihw):
    # PyTorch (Cout, Cin, kh, kw) -> (kh*kw*Cin, Cout), matching im2col flattening order.
    cout, cin, kh, kw = w_oihw.shape
    return jnp.transpose(w_oihw, (2, 3, 1, 0)).reshape(kh * kw * cin, cout)


def _bn_scale_shift(col_sum, col_sumsq, count, gamma_pad, beta_pad):
    # Training-mode BatchNorm2d: biased variance over N*H*W; folded into scale/shift.
    mean = col_sum / count
    var = jnp.maximum(col_sumsq / count - mean * mean, 0.0)
    scale = gamma_pad * jax.lax.rsqrt(var + _BN_EPS)
    shift = beta_pad - mean * scale
    return scale.reshape(1, -1), shift.reshape(1, -1)


def _choose_tm(m, kpad, cw):
    """Biggest row tile fitting the VMEM budget, keeping >=2 (pref >=4) grid blocks."""
    tm = 512
    def working_set(t):
        # double-buffered A tile + resident weight + y tile + stats tile
        return 2 * (t * kpad * 2 + kpad * cw * 2 + t * cw * 2 + 8 * cw * 4)
    while tm > 64 and working_set(tm) > _VMEM_BUDGET:
        tm //= 2
    while tm > 8 and _round_up(m, tm) // tm < 2:      # >=2 blocks (v7x: 2 TensorCores)
        tm //= 2
    while tm > 64 and _round_up(m, tm) // tm < 4:     # >=4 blocks for pipeline depth
        tm //= 2
    return max(tm, 8)


def init_resnet_block_params(key, in_channels, out_channels, stride):
    k1, k2, k3 = jax.random.split(key, 3)
    params = {
        "w1": 0.1 * jax.random.normal(k1, (out_channels, in_channels, 3, 3), jnp.float32),
        "g1": jnp.ones((out_channels,), jnp.float32),   # BatchNorm default init
        "b1": jnp.zeros((out_channels,), jnp.float32),
        "w2": 0.1 * jax.random.normal(k2, (out_channels, out_channels, 3, 3), jnp.float32),
        "g2": jnp.ones((out_channels,), jnp.float32),
        "b2": jnp.zeros((out_channels,), jnp.float32),
    }
    if stride != 1 or in_channels != out_channels:
        params["ws"] = 0.1 * jax.random.normal(
            k3, (out_channels, in_channels, 1, 1), jnp.float32)
        params["gs"] = jnp.ones((out_channels,), jnp.float32)
        params["bs"] = jnp.zeros((out_channels,), jnp.float32)
    return params


def resnet_block_forward(x_nchw, params, stride):
    # NCHW -> NHWC and bf16 BEFORE the im2col glue (halves the 9x-expanded HBM traffic).
    x = jnp.transpose(x_nchw, (0, 2, 3, 1)).astype(jnp.bfloat16)
    n, h, w, cin = x.shape
    cout = params["w1"].shape[0]
    ho = (h + 2 - 3) // stride + 1
    wo = (w + 2 - 3) // stride + 1
    m = n * ho * wo

    cpad = _round_up(cout, _LANE)                 # lane-dense output channels
    cw1 = 2 * cpad                                # conv1 columns + fused residual columns
    k1pad = _round_up(9 * cin, _LANE)
    k2pad = _round_up(9 * cout, _LANE)
    has_proj = (stride != 1) or (cin != cout)

    tm = _choose_tm(m, max(k1pad, k2pad), cw1)
    mpad = _round_up(m, tm)

    # ---- conv1 (3x3, stride, pad 1) im2col, bf16, K padded to 128 ----
    xp = jnp.pad(x, ((0, 0), (1, 1), (1, 1), (0, 0)))
    a1, _ = _im2col(xp, 3, stride)                               # (M, 9*Cin) bf16
    a1 = _pad_axis(_pad_axis(a1, 1, k1pad), 0, mpad)

    w1 = _pad_axis(_pad_axis(_conv_weight_to_matrix(params["w1"]), 0, k1pad), 1, cpad)
    g1 = _pad_axis(params["g1"], 0, cpad)        # zero-padded -> padded channels stay 0
    b1 = _pad_axis(params["b1"], 0, cpad)

    # Residual branch fused into conv1's matmul as extra output columns; its input rows are
    # exactly the centre tap (rows [4*Cin, 5*Cin)) of conv1's im2col.  Projection shortcut
    # uses the 1x1 weights, identity shortcut uses an identity block -> one unified path,
    # no separate padded residual array in HBM.
    if has_proj:
        wr = _conv_weight_to_matrix(params["ws"])                # (Cin, Cout)
    else:
        wr = jnp.eye(cin, cout, dtype=jnp.float32)
    wr_full = jnp.zeros((k1pad, cpad), jnp.float32)
    wr_full = wr_full.at[4 * cin:5 * cin, :cout].set(wr)
    wc = jnp.concatenate([w1, wr_full], axis=1).astype(jnp.bfloat16)   # (Kpad, 2*Cpad)

    y1, s1, ss1 = matmul_stats(a1, wc, tm=tm)    # pass A: conv1 (+shortcut) + partial stats
    scale1, shift1 = _bn_scale_shift(s1[:cpad], ss1[:cpad], m, g1, b1)
    h1 = affine(y1, scale1, shift1, tm=tm, cols=cpad, relu=True)   # pass B: bn1 + relu, bf16

    # ---- conv2 (3x3, stride 1, pad 1) ----
    h1_img = h1[:m, :cout].reshape(n, ho, wo, cout)
    hp_ = jnp.pad(h1_img, ((0, 0), (1, 1), (1, 1), (0, 0)))
    a2, _ = _im2col(hp_, 3, 1)                                   # (M, 9*Cout) bf16
    a2 = _pad_axis(_pad_axis(a2, 1, k2pad), 0, mpad)
    w2 = _pad_axis(_pad_axis(_conv_weight_to_matrix(params["w2"]), 0, k2pad),
                   1, cpad).astype(jnp.bfloat16)
    g2 = _pad_axis(params["g2"], 0, cpad)
    b2 = _pad_axis(params["b2"], 0, cpad)

    y2, s2, ss2 = matmul_stats(a2, w2, tm=tm)
    scale2, shift2 = _bn_scale_shift(s2, ss2, m, g2, b2)

    # ---- residual BN folded to rscale/rshift (identity -> scale 1, shift 0) ----
    if has_proj:
        gs = _pad_axis(params["gs"], 0, cpad)
        bs = _pad_axis(params["bs"], 0, cpad)
        rscale, rshift = _bn_scale_shift(s1[cpad:], ss1[cpad:], m, gs, bs)
    else:
        rscale = jnp.ones((1, cpad), jnp.float32)
        rshift = jnp.zeros((1, cpad), jnp.float32)

    # Final fused kernel: bn2 + residual-BN/identity + add + ReLU; residual read directly
    # from y1's extra columns (column block 1), no extra HBM round trip.
    out = bn_add_relu(y2, scale2, shift2, y1, rscale, rshift,
                      tm=tm, cols=cpad, res_col_block=1)

    out = out[:m, :cout].reshape(n, ho, wo, cout)
    return jnp.transpose(out, (0, 3, 1, 2))       # back to NCHW


if __name__ == "__main__":
    key = jax.random.PRNGKey(0)
    kx, kp1, kp2 = jax.random.split(key, 3)

    # Case 1: projection shortcut (stride=2, channel change), x: (2, 4, 16, 16) NCHW
    x = jax.random.normal(kx, (2, 4, 16, 16), jnp.float32)
    params = init_resnet_block_params(kp1, in_channels=4, out_channels=8, stride=2)
    fwd2 = jax.jit(functools.partial(resnet_block_forward, stride=2))
    y = jax.block_until_ready(fwd2(x, params))
    assert y.shape == (2, 8, 8, 8)
    assert bool(jnp.all(jnp.isfinite(y)))
    assert bool(jnp.all(y >= 0.0))                # final ReLU

    # Case 2: identity shortcut (stride=1, same channels)
    x2 = jax.random.normal(kx, (2, 8, 16, 16), jnp.float32)
    params2 = init_resnet_block_params(kp2, in_channels=8, out_channels=8, stride=1)
    fwd1 = jax.jit(functools.partial(resnet_block_forward, stride=1))
    y2 = jax.block_until_ready(fwd1(x2, params2))
    assert y2.shape == (2, 8, 16, 16)
    assert bool(jnp.all(jnp.isfinite(y2)))
    assert bool(jnp.all(y2 >= 0.0))

    print("KERNEL_OK")
</pallas_src>

<mosaic_0001>
module attributes {stable_mosaic.version = 11 : i64} {
  func.func @_matmul_stats_kernel(%arg0: i32, %arg1: memref<64x128xbf16, #tpu.memory_space<vmem>>, %arg2: memref<128x256xbf16, #tpu.memory_space<vmem>>, %arg3: memref<64x256xbf16, #tpu.memory_space<vmem>>, %arg4: memref<8x256xf32, #tpu.memory_space<vmem>>) attributes {dimension_semantics = [#tpu.dimension_semantics<parallel>], iteration_bounds = array<i64: 2>, scalar_prefetch = 0 : i64, scratch_operands = 0 : i64, tpu.core_type = #tpu.core_type<tc>, window_params = [{transform_indices = @transform_0, window_bounds = array<i64: 64, 128>}, {pipeline_mode = #tpu.pipeline_mode<synchronous>, transform_indices = @transform_1, window_bounds = array<i64: 128, 256>}, {transform_indices = @transform_2, window_bounds = array<i64: 64, 256>}, {transform_indices = @transform_3, window_bounds = array<i64: 8, 256>}]} {
    %c0 = arith.constant 0 : index
    %c0_0 = arith.constant 0 : index
    %0 = vector.load %arg1[%c0, %c0_0] : memref<64x128xbf16, #tpu.memory_space<vmem>>, vector<64x128xbf16>
    %c0_1 = arith.constant 0 : index
    %c0_2 = arith.constant 0 : index
    %1 = vector.load %arg2[%c0_1, %c0_2] : memref<128x256xbf16, #tpu.memory_space<vmem>>, vector<128x256xbf16>
    %cst = arith.constant dense<0.000000e+00> : vector<64x256xf32>
    %2 = tpu.matmul %0, %1, %cst {dimension_numbers = #tpu.dot_dimension_numbers<[1], [0], [0], [1], [0, 0, 1, 1], [], []>} : vector<64x128xbf16>, vector<128x256xbf16>, vector<64x256xf32> -> vector<64x256xf32>
    %3 = arith.truncf %2 : vector<64x256xf32> to vector<64x256xbf16>
    %c0_3 = arith.constant 0 : index
    %c0_4 = arith.constant 0 : index
    %4 = vector.load %arg3[%c0_3, %c0_4] : memref<64x256xbf16, #tpu.memory_space<vmem>>, vector<64x256xbf16>
    tpu.vector_store %arg3[%c0_3, %c0_4], %3 {strides = array<i32>} : memref<64x256xbf16, #tpu.memory_space<vmem>>, vector<64x256xbf16>,
    %cst_5 = arith.constant dense<0.000000e+00> : vector<256xf32>
    %5 = vector.multi_reduction <add>, %2, %cst_5 [0] : vector<64x256xf32> to vector<256xf32>
    %6 = vector.shape_cast %5 : vector<256xf32> to vector<1x256xf32>
    %7 = arith.mulf %2, %2 : vector<64x256xf32>
    %cst_6 = arith.constant dense<0.000000e+00> : vector<256xf32>
    %8 = vector.multi_reduction <add>, %7, %cst_6 [0] : vector<64x256xf32> to vector<256xf32>
    %9 = vector.shape_cast %8 : vector<256xf32> to vector<1x256xf32>
    %cst_7 = arith.constant 0.000000e+00 : f32
    %10 = vector.broadcast %cst_7 : f32 to vector<6x256xf32>
    %11 = tpu.concatenate %6, %9, %10 in 0 : vector<1x256xf32>, vector<1x256xf32>, vector<6x256xf32> -> vector<8x256xf32>
    %c0_8 = arith.constant 0 : index
    %c0_9 = arith.constant 0 : index
    %12 = vector.load %arg4[%c0_8, %c0_9] : memref<8x256xf32, #tpu.memory_space<vmem>>, vector<8x256xf32>
    tpu.vector_store %arg4[%c0_8, %c0_9], %11 {strides = array<i32>} : memref<8x256xf32, #tpu.memory_space<vmem>>, vector<8x256xf32>,
    return
  }
  func.func @transform_0(%arg0: i32) -> (i32, i32) {
    %c0_i32 = arith.constant 0 : i32
    %c0_i32_0 = arith.constant 0 : i32
    return %arg0, %c0_i32 : i32, i32
  }
  func.func @transform_1(%arg0: i32) -> (i32, i32) {
    %c0_i32 = arith.constant 0 : i32
    %c0_i32_0 = arith.constant 0 : i32
    %c0_i32_1 = arith.constant 0 : i32
    return %c0_i32, %c0_i32_0 : i32, i32
  }
  func.func @transform_2(%arg0: i32) -> (i32, i32) {
    %c0_i32 = arith.constant 0 : i32
    %c0_i32_0 = arith.constant 0 : i32
    return %arg0, %c0_i32 : i32, i32
  }
  func.func @transform_3(%arg0: i32) -> (i32, i32) {
    %c0_i32 = arith.constant 0 : i32
    %c0_i32_0 = arith.constant 0 : i32
    return %arg0, %c0_i32 : i32, i32
  }
}

module attributes {stable_mosaic.version = 11 : i64} {
  func.func @_affine_kernel(%arg0: i32, %arg1: memref<64x128xbf16, #tpu.memory_space<vmem>>, %arg2: memref<1x128xf32, #tpu.memory_space<vmem>>, %arg3: memref<1x128xf32, #tpu.memory_space<vmem>>, %arg4: memref<64x128xbf16, #tpu.memory_space<vmem>>) attributes {dimension_semantics = [#tpu.dimension_semantics<parallel>], iteration_bounds = array<i64: 2>, scalar_prefetch = 0 : i64, scratch_operands = 0 : i64, tpu.core_type = #tpu.core_type<tc>, window_params = [{transform_indices = @transform_0, window_bounds = array<i64: 64, 128>}, {pipeline_mode = #tpu.pipeline_mode<synchronous>, transform_indices = @transform_1, window_bounds = array<i64: 1, 128>}, {pipeline_mode = #tpu.pipeline_mode<synchronous>, transform_indices = @transform_2, window_bounds = array<i64: 1, 128>}, {transform_indices = @transform_3, window_bounds = array<i64: 64, 128>}]} {
    %c0 = arith.constant 0 : index
    %c0_0 = arith.constant 0 : index
    %0 = vector.load %arg1[%c0, %c0_0] : memref<64x128xbf16, #tpu.memory_space<vmem>>, vector<64x128xbf16>
    %1 = arith.extf %0 : vector<64x128xbf16> to vector<64x128xf32>
    %c0_1 = arith.constant 0 : index
    %c0_2 = arith.constant 0 : index
    %2 = vector.load %arg2[%c0_1, %c0_2] : memref<1x128xf32, #tpu.memory_space<vmem>>, vector<1x128xf32>
    %3 = vector.broadcast %2 : vector<1x128xf32> to vector<64x128xf32>
    %4 = arith.mulf %1, %3 : vector<64x128xf32>
    %c0_3 = arith.constant 0 : index
    %c0_4 = arith.constant 0 : index
    %5 = vector.load %arg3[%c0_3, %c0_4] : memref<1x128xf32, #tpu.memory_space<vmem>>, vector<1x128xf32>
    %6 = vector.broadcast %5 : vector<1x128xf32> to vector<64x128xf32>
    %7 = arith.addf %4, %6 : vector<64x128xf32>
    %cst = arith.constant 0.000000e+00 : f32
    %8 = vector.broadcast %cst : f32 to vector<64x128xf32>
    %9 = arith.maximumf %7, %8 : vector<64x128xf32>
    %10 = arith.truncf %9 : vector<64x128xf32> to vector<64x128xbf16>
    %c0_5 = arith.constant 0 : index
    %c0_6 = arith.constant 0 : index
    %11 = vector.load %arg4[%c0_5, %c0_6] : memref<64x128xbf16, #tpu.memory_space<vmem>>, vector<64x128xbf16>
    tpu.vector_store %arg4[%c0_5, %c0_6], %10 {strides = array<i32>} : memref<64x128xbf16, #tpu.memory_space<vmem>>, vector<64x128xbf16>,
    return
  }
  func.func @transform_0(%arg0: i32) -> (i32, i32) {
    %c0_i32 = arith.constant 0 : i32
    %c0_i32_0 = arith.constant 0 : i32
    return %arg0, %c0_i32 : i32, i32
  }
  func.func @transform_1(%arg0: i32) -> (i32, i32) {
    %c0_i32 = arith.constant 0 : i32
    %c0_i32_0 = arith.constant 0 : i32
    %c0_i32_1 = arith.constant 0 : i32
    return %c0_i32, %c0_i32_0 : i32, i32
  }
  func.func @transform_2(%arg0: i32) -> (i32, i32) {
    %c0_i32 = arith.constant 0 : i32
    %c0_i32_0 = arith.constant 0 : i32
    %c0_i32_1 = arith.constant 0 : i32
    return %c0_i32, %c0_i32_0 : i32, i32
  }
  func.func @transform_3(%arg0: i32) -> (i32, i32) {
    %c0_i32 = arith.constant 0 : i32
    %c0_i32_0 = arith.constant 0 : i32
    return %arg0, %c0_i32 : i32, i32
  }
}

module attributes {stable_mosaic.version = 11 : i64} {
  func.func @_matmul_stats_kernel(%arg0: i32, %arg1: memref<64x128xbf16, #tpu.memory_space<vmem>>, %arg2: memref<128x128xbf16, #tpu.memory_space<vmem>>, %arg3: memref<64x128xbf16, #tpu.memory_space<vmem>>, %arg4: memref<8x128xf32, #tpu.memory_space<vmem>>) attributes {dimension_semantics = [#tpu.dimension_semantics<parallel>], iteration_bounds = array<i64: 2>, scalar_prefetch = 0 : i64, scratch_operands = 0 : i64, tpu.core_type = #tpu.core_type<tc>, window_params = [{transform_indices = @transform_0, window_bounds = array<i64: 64, 128>}, {pipeline_mode = #tpu.pipeline_mode<synchronous>, transform_indices = @transform_1, window_bounds = array<i64: 128, 128>}, {transform_indices = @transform_2, window_bounds = array<i64: 64, 128>}, {transform_indices = @transform_3, window_bounds = array<i64: 8, 128>}]} {
    %c0 = arith.constant 0 : index
    %c0_0 = arith.constant 0 : index
    %0 = vector.load %arg1[%c0, %c0_0] : memref<64x128xbf16, #tpu.memory_space<vmem>>, vector<64x128xbf16>
    %c0_1 = arith.constant 0 : index
    %c0_2 = arith.constant 0 : index
    %1 = vector.load %arg2[%c0_1, %c0_2] : memref<128x128xbf16, #tpu.memory_space<vmem>>, vector<128x128xbf16>
    %cst = arith.constant dense<0.000000e+00> : vector<64x128xf32>
    %2 = tpu.matmul %0, %1, %cst {dimension_numbers = #tpu.dot_dimension_numbers<[1], [0], [0], [1], [0, 0, 1, 1], [], []>} : vector<64x128xbf16>, vector<128x128xbf16>, vector<64x128xf32> -> vector<64x128xf32>
    %3 = arith.truncf %2 : vector<64x128xf32> to vector<64x128xbf16>
    %c0_3 = arith.constant 0 : index
    %c0_4 = arith.constant 0 : index
    %4 = vector.load %arg3[%c0_3, %c0_4] : memref<64x128xbf16, #tpu.memory_space<vmem>>, vector<64x128xbf16>
    tpu.vector_store %arg3[%c0_3, %c0_4], %3 {strides = array<i32>} : memref<64x128xbf16, #tpu.memory_space<vmem>>, vector<64x128xbf16>,
    %cst_5 = arith.constant dense<0.000000e+00> : vector<128xf32>
    %5 = vector.multi_reduction <add>, %2, %cst_5 [0] : vector<64x128xf32> to vector<128xf32>
    %6 = vector.shape_cast %5 : vector<128xf32> to vector<1x128xf32>
    %7 = arith.mulf %2, %2 : vector<64x128xf32>
    %cst_6 = arith.constant dense<0.000000e+00> : vector<128xf32>
    %8 = vector.multi_reduction <add>, %7, %cst_6 [0] : vector<64x128xf32> to vector<128xf32>
    %9 = vector.shape_cast %8 : vector<128xf32> to vector<1x128xf32>
    %cst_7 = arith.constant 0.000000e+00 : f32
    %10 = vector.broadcast %cst_7 : f32 to vector<6x128xf32>
    %11 = tpu.concatenate %6, %9, %10 in 0 : vector<1x128xf32>, vector<1x128xf32>, vector<6x128xf32> -> vector<8x128xf32>
    %c0_8 = arith.constant 0 : index
    %c0_9 = arith.constant 0 : index
    %12 = vector.load %arg4[%c0_8, %c0_9] : memref<8x128xf32, #tpu.memory_space<vmem>>, vector<8x128xf32>
    tpu.vector_store %arg4[%c0_8, %c0_9], %11 {strides = array<i32>} : memref<8x128xf32, #tpu.memory_space<vmem>>, vector<8x128xf32>,
    return
  }
  func.func @transform_0(%arg0: i32) -> (i32, i32) {
    %c0_i32 = arith.constant 0 : i32
    %c0_i32_0 = arith.constant 0 : i32
    return %arg0, %c0_i32 : i32, i32
  }
  func.func @transform_1(%arg0: i32) -> (i32, i32) {
    %c0_i32 = arith.constant 0 : i32
    %c0_i32_0 = arith.constant 0 : i32
    %c0_i32_1 = arith.constant 0 : i32
    return %c0_i32, %c0_i32_0 : i32, i32
  }
  func.func @transform_2(%arg0: i32) -> (i32, i32) {
    %c0_i32 = arith.constant 0 : i32
    %c0_i32_0 = arith.constant 0 : i32
    return %arg0, %c0_i32 : i32, i32
  }
  func.func @transform_3(%arg0: i32) -> (i32, i32) {
    %c0_i32 = arith.constant 0 : i32
    %c0_i32_0 = arith.constant 0 : i32
    return %arg0, %c0_i32 : i32, i32
  }
}

module attributes {stable_mosaic.version = 11 : i64} {
  func.func @_bn_add_relu_kernel(%arg0: i32, %arg1: memref<64x128xbf16, #tpu.memory_space<vmem>>, %arg2: memref<64x128xbf16, #tpu.memory_space<vmem>>, %arg3: memref<1x128xf32, #tpu.memory_space<vmem>>, %arg4: memref<1x128xf32, #tpu.memory_space<vmem>>, %arg5: memref<1x128xf32, #tpu.memory_space<vmem>>, %arg6: memref<1x128xf32, #tpu.memory_space<vmem>>, %arg7: memref<64x128xf32, #tpu.memory_space<vmem>>) attributes {dimension_semantics = [#tpu.dimension_semantics<parallel>], iteration_bounds = array<i64: 2>, scalar_prefetch = 0 : i64, scratch_operands = 0 : i64, tpu.core_type = #tpu.core_type<tc>, window_params = [{transform_indices = @transform_0, window_bounds = array<i64: 64, 128>}, {transform_indices = @transform_1, window_bounds = array<i64: 64, 128>}, {pipeline_mode = #tpu.pipeline_mode<synchronous>, transform_indices = @transform_2, window_bounds = array<i64: 1, 128>}, {pipeline_mode = #tpu.pipeline_mode<synchronous>, transform_indices = @transform_3, window_bounds = array<i64: 1, 128>}, {pipeline_mode = #tpu.pipeline_mode<synchronous>, transform_indices = @transform_4, window_bounds = array<i64: 1, 128>}, {pipeline_mode = #tpu.pipeline_mode<synchronous>, transform_indices = @transform_5, window_bounds = array<i64: 1, 128>}, {transform_indices = @transform_6, window_bounds = array<i64: 64, 128>}]} {
    %c0 = arith.constant 0 : index
    %c0_0 = arith.constant 0 : index
    %0 = vector.load %arg1[%c0, %c0_0] : memref<64x128xbf16, #tpu.memory_space<vmem>>, vector<64x128xbf16>
    %1 = arith.extf %0 : vector<64x128xbf16> to vector<64x128xf32>
    %c0_1 = arith.constant 0 : index
    %c0_2 = arith.constant 0 : index
    %2 = vector.load %arg3[%c0_1, %c0_2] : memref<1x128xf32, #tpu.memory_space<vmem>>, vector<1x128xf32>
    %3 = vector.broadcast %2 : vector<1x128xf32> to vector<64x128xf32>
    %4 = arith.mulf %1, %3 : vector<64x128xf32>
    %c0_3 = arith.constant 0 : index
    %c0_4 = arith.constant 0 : index
    %5 = vector.load %arg4[%c0_3, %c0_4] : memref<1x128xf32, #tpu.memory_space<vmem>>, vector<1x128xf32>
    %6 = vector.broadcast %5 : vector<1x128xf32> to vector<64x128xf32>
    %7 = arith.addf %4, %6 : vector<64x128xf32>
    %c0_5 = arith.constant 0 : index
    %c0_6 = arith.constant 0 : index
    %8 = vector.load %arg2[%c0_5, %c0_6] : memref<64x128xbf16, #tpu.memory_space<vmem>>, vector<64x128xbf16>
    %9 = arith.extf %8 : vector<64x128xbf16> to vector<64x128xf32>
    %c0_7 = arith.constant 0 : index
    %c0_8 = arith.constant 0 : index
    %10 = vector.load %arg5[%c0_7, %c0_8] : memref<1x128xf32, #tpu.memory_space<vmem>>, vector<1x128xf32>
    %11 = vector.broadcast %10 : vector<1x128xf32> to vector<64x128xf32>
    %12 = arith.mulf %9, %11 : vector<64x128xf32>
    %13 = arith.addf %7, %12 : vector<64x128xf32>
    %c0_9 = arith.constant 0 : index
    %c0_10 = arith.constant 0 : index
    %14 = vector.load %arg6[%c0_9, %c0_10] : memref<1x128xf32, #tpu.memory_space<vmem>>, vector<1x128xf32>
    %15 = vector.broadcast %14 : vector<1x128xf32> to vector<64x128xf32>
    %16 = arith.addf %13, %15 : vector<64x128xf32>
    %cst = arith.constant 0.000000e+00 : f32
    %17 = vector.broadcast %cst : f32 to vector<64x128xf32>
    %18 = arith.maximumf %16, %17 : vector<64x128xf32>
    %c0_11 = arith.constant 0 : index
    %c0_12 = arith.constant 0 : index
    %19 = vector.load %arg7[%c0_11, %c0_12] : memref<64x128xf32, #tpu.memory_space<vmem>>, vector<64x128xf32>
    tpu.vector_store %arg7[%c0_11, %c0_12], %18 {strides = array<i32>} : memref<64x128xf32, #tpu.memory_space<vmem>>, vector<64x128xf32>,
    return
  }
  func.func @transform_0(%arg0: i32) -> (i32, i32) {
    %c0_i32 = arith.constant 0 : i32
    %c0_i32_0 = arith.constant 0 : i32
    return %arg0, %c0_i32 : i32, i32
  }
  func.func @transform_1(%arg0: i32) -> (i32, i32) {
    %c1_i32 = arith.constant 1 : i32
    %c0_i32 = arith.constant 0 : i32
    return %arg0, %c1_i32 : i32, i32
  }
  func.func @transform_2(%arg0: i32) -> (i32, i32) {
    %c0_i32 = arith.constant 0 : i32
    %c0_i32_0 = arith.constant 0 : i32
    %c0_i32_1 = arith.constant 0 : i32
    return %c0_i32, %c0_i32_0 : i32, i32
  }
  func.func @transform_3(%arg0: i32) -> (i32, i32) {
    %c0_i32 = arith.constant 0 : i32
    %c0_i32_0 = arith.constant 0 : i32
    %c0_i32_1 = arith.constant 0 : i32
    return %c0_i32, %c0_i32_0 : i32, i32
  }
  func.func @transform_4(%arg0: i32) -> (i32, i32) {
    %c0_i32 = arith.constant 0 : i32
    %c0_i32_0 = arith.constant 0 : i32
    %c0_i32_1 = arith.constant 0 : i32
    return %c0_i32, %c0_i32_0 : i32, i32
  }
  func.func @transform_5(%arg0: i32) -> (i32, i32) {
    %c0_i32 = arith.constant 0 : i32
    %c0_i32_0 = arith.constant 0 : i32
    %c0_i32_1 = arith.constant 0 : i32
    return %c0_i32, %c0_i32_0 : i32, i32
  }
  func.func @transform_6(%arg0: i32) -> (i32, i32) {
    %c0_i32 = arith.constant 0 : i32
    %c0_i32_0 = arith.constant 0 : i32
    return %arg0, %c0_i32 : i32, i32
  }
}

</mosaic_0001>

<llo_original>
// kernel: resnet_block_forward.5
$region0: #{resnet_block_forward.5}
  #allocation0 [shape = 'u32[]', space=smem, size = 0x4, offset = 0x4, fixed_abs, tag = 'smem constant byte address 0x4 - core index']
  #allocation1 [shape = 'u32[144,128]{1,0:T(1,128)}', space=vmem, size = 0x12000, scoped, tag = 'internal scratch']
  %s0 = inlined_call_operand.vmem [shape: bf16[128,256], index: 0, kind: input, shape index: {}]
  %s1 = inlined_call_operand.vmem [shape: f32[1,128], index: 1, kind: input, shape index: {}]
  %s2 = inlined_call_operand.vmem [shape: f32[1,128], index: 2, kind: input, shape index: {}]
  %s3 = inlined_call_operand.vmem [shape: bf16[128,128], index: 3, kind: output, shape index: {}]
  %s4 = sld [smem:[#allocation0]]
  $region86: #{resnet_block_forward.5} parent=0
    _
  %s6 = ssub.s32 1, %s4
  %s7 = scalar_select 0, %s6, %s4
  $region1: #{resnet_block_forward.5} parent=0
    #allocation2 [shape = 'u8[32768]{0}', space=vmem, size = 0x8000, scoped, tag = 'input window, operand 0']
    loop: start=0, step=1, limit=4
    $region2: #{resnet_block_forward.5} parent=1 // loop_pre_header
      _
    $region3: #{resnet_block_forward.5} parent=1 // loop_header
      %s9 = sphi 0, %s13
      %p10 = scmp.ge.s32.totalorder %s9, 4
      %s19 = sphi 0, %s21
      %s22 = sphi 0, %s19
      %s23 = sphi 0, %s22
      %s39 = sphi 0, %s23
      %s43 = sphi 0, %s43
      %s45 = sphi 0, %s43
      %s46 = sphi 0, %s45
      %s60 = sphi 0, %s46
      %s64 = sphi 0, %s64
      %s66 = sphi 0, %s64
      %s67 = sphi 0, %s66
      %s81 = sphi 0, %s67
      %s87 = sphi 0, %s89
      %s90 = sphi 0, %s87
      %s91 = sphi 0, %s90
      %s107 = sphi 0, %s91
    $region4: #{resnet_block_forward.5} parent=1 // loop_header_branch
      %12 = sbr.rel (%p10) target = $region8
    $region5: #{resnet_block_forward.5} parent=1 // loop_body
      %s14 = ssub.s32 %s9, 1
      %s15 = ssub.s32 %s9, 2
      %s16 = sadd.s32 %s9, 1
      %s17 = ssub.s32 %s9, %s16
      %p18 = scmp.eq.s32.totalorder %s17, 0
      %s20 = sadd.s32 %s19, 1
      %s21 = scalar_select %p18, %s19, %s20
      %p24 = pneg %p18
      %p25 = scmp.eq.s32.totalorder %s9, 1
      %p26 = por %p24, %p25
      %p27 = scmp.ne.s32.totalorder %s19, %s22
      %p28 = scmp.eq.s32.totalorder %s9, 0
      %p29 = por %p27, %p28
      %p30 = scmp.ne.s32.totalorder %s19, %s22
      %p31 = scmp.eq.s32.totalorder %s14, 1
      %p32 = por %p30, %p31
      %p33 = scmp.ne.s32.totalorder %s22, %s23
      %p34 = scmp.eq.s32.totalorder %s14, 0
      %p35 = por %p33, %p34
      %p36 = scmp.ne.s32.totalorder %s22, %s23
      %p37 = scmp.eq.s32.totalorder %s15, 1
      %p38 = por %p36, %p37
      %p40 = scmp.ne.s32.totalorder %s23, %s39
      %p41 = scmp.eq.s32.totalorder %s15, 0
      %p42 = por %p40, %p41
      %s44 = sadd.s32 %s43, 1
      %p47 = scmp.eq.s32.totalorder %s9, 1
      %p48 = scmp.ne.s32.totalorder %s43, %s45
      %p49 = scmp.eq.s32.totalorder %s9, 0
      %p50 = por %p48, %p49
      %p51 = scmp.ne.s32.totalorder %s43, %s45
      %p52 = scmp.eq.s32.totalorder %s14, 1
      %p53 = por %p51, %p52
      %p54 = scmp.ne.s32.totalorder %s45, %s46
      %p55 = scmp.eq.s32.totalorder %s14, 0
      %p56 = por %p54, %p55
      %p57 = scmp.ne.s32.totalorder %s45, %s46
      %p58 = scmp.eq.s32.totalorder %s15, 1
      %p59 = por %p57, %p58
      %p61 = scmp.ne.s32.totalorder %s46, %s60
      %p62 = scmp.eq.s32.totalorder %s15, 0
      %p63 = por %p61, %p62
      %s65 = sadd.s32 %s64, 1
      %p68 = scmp.eq.s32.totalorder %s9, 1
      %p69 = scmp.ne.s32.totalorder %s64, %s66
      %p70 = scmp.eq.s32.totalorder %s9, 0
      %p71 = por %p69, %p70
      %p72 = scmp.ne.s32.totalorder %s64, %s66
      %p73 = scmp.eq.s32.totalorder %s14, 1
      %p74 = por %p72, %p73
      %p75 = scmp.ne.s32.totalorder %s66, %s67
      %p76 = scmp.eq.s32.totalorder %s14, 0
      %p77 = por %p75, %p76
      %p78 = scmp.ne.s32.totalorder %s66, %s67
      %p79 = scmp.eq.s32.totalorder %s15, 1
      %p80 = por %p78, %p79
      %p82 = scmp.ne.s32.totalorder %s67, %s81
      %p83 = scmp.eq.s32.totalorder %s15, 0
      %p84 = por %p82, %p83
      %s85 = ssub.s32 %s9, %s16
      %p86 = scmp.eq.s32.totalorder %s85, 0
      %s88 = sadd.s32 %s87, 1
      %s89 = scalar_select %p86, %s87, %s88
      %p92 = pneg %p86
      %p93 = scmp.eq.s32.totalorder %s9, 1
      %p94 = por %p92, %p93
      %p95 = scmp.ne.s32.totalorder %s87, %s90
      %p96 = scmp.eq.s32.totalorder %s9, 0
      %p97 = por %p95, %p96
      %p98 = scmp.ne.s32.totalorder %s87, %s90
      %p99 = scmp.eq.s32.totalorder %s14, 1
      %p100 = por %p98, %p99
      %p101 = scmp.ne.s32.totalorder %s90, %s91
      %p102 = scmp.eq.s32.totalorder %s14, 0
      %p103 = por %p101, %p102
      %p104 = scmp.ne.s32.totalorder %s90, %s91
      %p105 = scmp.eq.s32.totalorder %s15, 1
      %p106 = por %p104, %p105
      %p108 = scmp.ne.s32.totalorder %s91, %s107
      %p109 = scmp.eq.s32.totalorder %s15, 0
      %p110 = por %p108, %p109
      %p111 = scmp.le.s32.totalorder 1, %s9
      %p112 = scmp.lt.s32.totalorder %s9, 3
      %p113 = pnand %p111, %p112
      %p114 = pneg %p113
      // Predicated region
      $region9: #{resnet_block_forward.5} parent=5 // pred_check
        _
      $region10: #{resnet_block_forward.5} parent=5 // pred_check_branch
        %116 = sbr.rel (%p113) target = $region12
      $region11: #{resnet_block_forward.5} parent=5 // pred_region
        %s117 = ssub.s32 %s9, 1
        // Predicated region
        $region13: #{resnet_block_forward.5} parent=11 // pred_check
          %p118 = pneg %p56
        $region14: #{resnet_block_forward.5} parent=11 // pred_check_branch
          %120 = sbr.rel (%p118) target = $region16
        $region15: #{resnet_block_forward.5} parent=11 // pred_region
          _
        $region16: #{resnet_block_forward.5} parent=11 // pred_fallthru
          _
        // Predicated region
        $region17: #{resnet_block_forward.5} parent=11 // pred_check
          %p121 = pneg %p77
        $region18: #{resnet_block_forward.5} parent=11 // pred_check_branch
          %123 = sbr.rel (%p121) target = $region20
        $region19: #{resnet_block_forward.5} parent=11 // pred_region
          _
        $region20: #{resnet_block_forward.5} parent=11 // pred_fallthru
          _
      $region12: #{resnet_block_forward.5} parent=5 // pred_fallthru
        _
      %p124 = scmp.lt.s32.totalorder %s9, 2
      // Predicated region
      $region21: #{resnet_block_forward.5} parent=5 // pred_check
        %p125 = pneg %p124
      $region22: #{resnet_block_forward.5} parent=5 // pred_check_branch
        %127 = sbr.rel (%p125) target = $region24
      $region23: #{resnet_block_forward.5} parent=5 // pred_region
        // Predicated region
        $region25: #{resnet_block_forward.5} parent=23 // pred_check
          %p128 = pneg %p29
        $region26: #{resnet_block_forward.5} parent=23 // pred_check_branch
          %130 = sbr.rel (%p128) target = $region28
        $region27: #{resnet_block_forward.5} parent=23 // pred_region
          %s131 = sand.u32 %s19, 1
          %s132 = sand.u32 %s19, 1
          %s133 = smul.addr %s132, 32
          %s134 = scalar_lea.vmem [#allocation2], %s133
          %s135 = smul.u32 8, %s9
          %s136 = smul.addr %s135, 2
          %s137 = smul.addr %s136, 4
          %s138 = scalar_lea.vmem %s0, %s137
          // Predicated region
          $region29: #{resnet_block_forward.5} parent=27 // pred_check
            _
          $region30: #{resnet_block_forward.5} parent=27 // pred_check_branch
            %140 = sbr.rel (0) target = $region32
          $region31: #{resnet_block_forward.5} parent=27 // pred_region
            // Predicated region
            $region33: #{resnet_block_forward.5} parent=31 // pred_check
              _
            $region34: #{resnet_block_forward.5} parent=31 // pred_check_branch
              %142 = sbr.rel target = $region36
            $region35: #{resnet_block_forward.5} parent=31 // pred_region
              // Predicated region
              $region48: #{resnet_block_forward.5} parent=35 // pred_check
                _
              $region49: #{resnet_block_forward.5} parent=35 // pred_check_branch
                %172 = sbr.rel (0) target = $region51
              $region50: #{resnet_block_forward.5} parent=35 // pred_region
                loop: start=0, step=1, limit=1
                $region52: #{resnet_block_forward.5} parent=50 // loop_pre_header
                  _
                $region53: #{resnet_block_forward.5} parent=50 // loop_header
                  %s174 = sphi 0, %s178
                  %p175 = scmp.ge.s32.totalorder %s174, 1
                  %s179 = sphi %s138, %s138
                  %s180 = sphi %s134, %s134
                $region54: #{resnet_block_forward.5} parent=50 // loop_header_branch
                  %177 = sbr.rel (%p175) target = $region58
                $region55: #{resnet_block_forward.5} parent=50 // loop_body
                  _
                $region56: #{resnet_block_forward.5} parent=50 // loop_footer
                  %s178 = sadd.s32 1, %s174
                $region57: #{resnet_block_forward.5} parent=50 // loop_footer_branch
                  %173 = sbr.rel target = $region53
                $region58: #{resnet_block_forward.5} parent=50 // loop_exit
                  _
                %s182 = ssub.s32 16, 1
                loop: start=0, step=1, limit=1
                $region59: #{resnet_block_forward.5} parent=50 // loop_pre_header
                  _
                $region60: #{resnet_block_forward.5} parent=50 // loop_header
                  %s184 = sphi 0, %s188
                  %p185 = scmp.ge.s32.totalorder %s184, 1
                  %s189 = sphi %s138, %s138
                  %s190 = sphi %s134, %s134
                $region61: #{resnet_block_forward.5} parent=50 // loop_header_branch
                  %187 = sbr.rel (%p185) target = $region65
                $region62: #{resnet_block_forward.5} parent=50 // loop_body
                  %v191 = vld [vmem:[%s189] sm:%s182]
                  %192 = vst [vmem:[%s190] sm:%s182] %v191
                  %v193 = vld [vmem:[%s189 + $0x8] sm:%s182]
                  %194 = vst [vmem:[%s190 + $0x4] sm:%s182] %v193
                  %v195 = vld [vmem:[%s189 + $0x10] sm:%s182]
                  %196 = vst [vmem:[%s190 + $0x8] sm:%s182] %v195
                  %v197 = vld [vmem:[%s189 + $0x18] sm:%s182]
                  %198 = vst [vmem:[%s190 + $0xc] sm:%s182] %v197
                  %v199 = vld [vmem:[%s189 + $0x20] sm:%s182]
                  %200 = vst [vmem:[%s190 + $0x10] sm:%s182] %v199
                  %v201 = vld [vmem:[%s189 + $0x28] sm:%s182]
                  %202 = vst [vmem:[%s190 + $0x14] sm:%s182] %v201
                  %v203 = vld [vmem:[%s189 + $0x30] sm:%s182]
                  %204 = vst [vmem:[%s190 + $0x18] sm:%s182] %v203
                  %v205 = vld [vmem:[%s189 + $0x38] sm:%s182]
                  %206 = vst [vmem:[%s190 + $0x1c] sm:%s182] %v205
                $region63: #{resnet_block_forward.5} parent=50 // loop_footer
                  %s188 = sadd.s32 1, %s184
                $region64: #{resnet_block_forward.5} parent=50 // loop_footer_branch
                  %183 = sbr.rel target = $region60
                $region65: #{resnet_block_forward.5} parent=50 // loop_exit
                  _
              $region51: #{resnet_block_forward.5} parent=35 // pred_fallthru
                _
            $region36: #{resnet_block_forward.5} parent=31 // pred_fallthru
              _
            // Predicated region
            $region37: #{resnet_block_forward.5} parent=31 // pred_check
              _
            $region38: #{resnet_block_forward.5} parent=31 // pred_check_branch
              %144 = sbr.rel (0) target = $region40
            $region39: #{resnet_block_forward.5} parent=31 // pred_region
              %s146 = ssub.s32 16, 1
              loop: start=0, step=1, limit=1
              $region41: #{resnet_block_forward.5} parent=39 // loop_pre_header
                _
              $region42: #{resnet_block_forward.5} parent=39 // loop_header
                %s148 = sphi 0, %s152
                %p149 = scmp.ge.s32.totalorder %s148, 1
                %s153 = sphi %s138, %s138
                %s154 = sphi %s134, %s134
              $region43: #{resnet_block_forward.5} parent=39 // loop_header_branch
                %151 = sbr.rel (%p149) target = $region47
              $region44: #{resnet_block_forward.5} parent=39 // loop_body
                %v155 = vld [vmem:[%s153] sm:%s146]
                %156 = vst [vmem:[%s154] sm:%s146] %v155
                %v157 = vld [vmem:[%s153 + $0x8] sm:%s146]
                %158 = vst [vmem:[%s154 + $0x4] sm:%s146] %v157
                %v159 = vld [vmem:[%s153 + $0x10] sm:%s146]
                %160 = vst [vmem:[%s154 + $0x8] sm:%s146] %v159
                %v161 = vld [vmem:[%s153 + $0x18] sm:%s146]
                %162 = vst [vmem:[%s154 + $0xc] sm:%s146] %v161
                %v163 = vld [vmem:[%s153 + $0x20] sm:%s146]
                %164 = vst [vmem:[%s154 + $0x10] sm:%s146] %v163
                %v165 = vld [vmem:[%s153 + $0x28] sm:%s146]
                %166 = vst [vmem:[%s154 + $0x14] sm:%s146] %v165
                %v167 = vld [vmem:[%s153 + $0x30] sm:%s146]
                %168 = vst [vmem:[%s154 + $0x18] sm:%s146] %v167
                %v169 = vld [vmem:[%s153 + $0x38] sm:%s146]
                %170 = vst [vmem:[%s154 + $0x1c] sm:%s146] %v169
              $region45: #{resnet_block_forward.5} parent=39 // loop_footer
                %s152 = sadd.s32 1, %s148
              $region46: #{resnet_block_forward.5} parent=39 // loop_footer_branch
                %147 = sbr.rel target = $region42
              $region47: #{resnet_block_forward.5} parent=39 // loop_exit
                _
            $region40: #{resnet_block_forward.5} parent=31 // pred_fallthru
              _
          $region32: #{resnet_block_forward.5} parent=27 // pred_fallthru
            _
          %207 = vnop
        $region28: #{resnet_block_forward.5} parent=23 // pred_fallthru
          _
      $region24: #{resnet_block_forward.5} parent=5 // pred_fallthru
        _
      %p208 = scmp.le.s32.totalorder 1, %s9
      %p209 = scmp.lt.s32.totalorder %s9, 3
      %p210 = pnand %p208, %p209
      %p211 = pneg %p210
      // Predicated region
      $region66: #{resnet_block_forward.5} parent=5 // pred_check
        _
      $region67: #{resnet_block_forward.5} parent=5 // pred_check_branch
        %213 = sbr.rel (%p210) target = $region69
      $region68: #{resnet_block_forward.5} parent=5 // pred_region
        %s214 = ssub.s32 %s9, 1
        %s215 = sand.u32 %s22, 1
        %s216 = sand.u32 %s22, 1
        %s217 = smul.addr %s216, 32
        %s218 = scalar_lea.vmem [#allocation2], %s217
        // Predicated region
        $region70: #{resnet_block_forward.5} parent=68 // pred_check
          %p219 = pneg %p35
        $region71: #{resnet_block_forward.5} parent=68 // pred_check_branch
          %221 = sbr.rel (%p219) target = $region73
        $region72: #{resnet_block_forward.5} parent=68 // pred_region
          _
        $region73: #{resnet_block_forward.5} parent=68 // pred_fallthru
          _
        %s222 = sand.u32 %s22, 1
        %s223 = sand.u32 %s22, 1
        %s224 = smul.addr %s223, 32
        %s225 = scalar_lea.vmem [#allocation2], %s224
        %p226 = pneg %p35
        %p227 = pneg %p32
        %p228 = pneg %p56
        %p229 = pneg %p53
        %p230 = pneg %p77
        %p231 = pneg %p74
        %p232 = pneg %p103
        %p233 = pneg %p100
        %s234 = smul.u32 8, %s14
        %p235 = scmp.lt.s32.totalorder %s234, 15
        %s236 = scalar_select %p235, %s234, 15
        %s237 = smul.addr %s236, 4
        %s238 = scalar_lea.vmem %s3, %s237
        %s239 = smul.u32 8, %s14
        %s240 = smul.u32 8, %s14
        %p241 = scmp.lt.s32.totalorder %s240, 15
        %s242 = scalar_select %p241, %s240, 15
        %s243 = smul.addr %s242, 4
        %s244 = scalar_lea.vmem %s3, %s243
        %s245 = smul.u32 8, %s14
        %v246 = vld [vmem:[%s218] sm:$0xf]
        %v247 = vld [vmem:[%s218 + $0x4] sm:$0xf]
        %v248 = vld [vmem:[%s218 + $0x8] sm:$0xf]
        %v249 = vld [vmem:[%s218 + $0xc] sm:$0xf]
        %v250 = vld [vmem:[%s218 + $0x10] sm:$0xf]
        %v251 = vld [vmem:[%s218 + $0x14] sm:$0xf]
        %v252 = vld [vmem:[%s218 + $0x18] sm:$0xf]
        %v253 = vld [vmem:[%s218 + $0x1c] sm:$0xf]
        %v254 = vunpack.c.l.bf16 %v246
        %v255 = vunpack.c.l.bf16 %v247
        %v256 = vunpack.c.l.bf16 %v248
        %v257 = vunpack.c.l.bf16 %v249
        %v258 = vunpack.c.l.bf16 %v250
        %v259 = vunpack.c.l.bf16 %v251
        %v260 = vunpack.c.l.bf16 %v252
        %v261 = vunpack.c.l.bf16 %v253
        %v262 = vld [vmem:[%s1] sm:$0x1]
        %v264 = vlaneseq
        %v265 = vshrl.u32 %v264, 7
        %v266 = vsub.s32 0, %v265
        %v267 = vrot.slane %v262, %v266
        %v269 = vmul.f32 %v254, %v267
        %v270 = vmul.f32 %v255, %v267
        %v271 = vmul.f32 %v256, %v267
        %v272 = vmul.f32 %v257, %v267
        %v273 = vmul.f32 %v258, %v267
        %v274 = vmul.f32 %v259, %v267
        %v275 = vmul.f32 %v260, %v267
        %v276 = vmul.f32 %v261, %v267
        %v277 = vld [vmem:[%s2] sm:$0x1]
        %v279 = vlaneseq
        %v280 = vshrl.u32 %v279, 7
        %v281 = vsub.s32 0, %v280
        %v282 = vrot.slane %v277, %v281
        %v284 = vadd.f32 %v269, %v282
        %v285 = vadd.f32 %v270, %v282
        %v286 = vadd.f32 %v271, %v282
        %v287 = vadd.f32 %v272, %v282
        %v288 = vadd.f32 %v273, %v282
        %v289 = vadd.f32 %v274, %v282
        %v290 = vadd.f32 %v275, %v282
        %v291 = vadd.f32 %v276, %v282
        %v292 = vmax.f32 %v284, 0.0
        %v293 = vmax.f32 %v285, 0.0
        %v294 = vmax.f32 %v286, 0.0
        %v295 = vmax.f32 %v287, 0.0
        %v296 = vmax.f32 %v288, 0.0
        %v297 = vmax.f32 %v289, 0.0
        %v298 = vmax.f32 %v290, 0.0
        %v299 = vmax.f32 %v291, 0.0
        %v300 = vpack.c.bf16 %v293, %v292
        %v301 = vpack.c.bf16 %v295, %v294
        %v302 = vpack.c.bf16 %v297, %v296
        %v303 = vpack.c.bf16 %v299, %v298
        %v308 = vunpack.c.l.b16 %v300
        %v309 = vunpack.c.h.b16 %v300
        %v310 = vunpack.c.l.b16 %v301
        %v311 = vunpack.c.h.b16 %v301
        %v312 = vunpack.c.l.b16 %v302
        %v313 = vunpack.c.h.b16 %v302
        %v314 = vunpack.c.l.b16 %v303
        %v315 = vunpack.c.h.b16 %v303
        %v316 = vpack.c.b16 %v308, %v308
        %v317 = vpack.c.b16 %v309, %v309
        %v318 = vpack.c.b16 %v310, %v310
        %v319 = vpack.c.b16 %v311, %v311
        %v320 = vpack.c.b16 %v312, %v312
        %v321 = vpack.c.b16 %v313, %v313
        %v322 = vpack.c.b16 %v314, %v314
        %v323 = vpack.c.b16 %v315, %v315
        %332 = vst [vmem:[%s244] sm:$0xf] %v316
        %333 = vst [vmem:[%s244 + $0x4] sm:$0xf] %v317
        %334 = vst [vmem:[%s244 + $0x8] sm:$0xf] %v318
        %335 = vst [vmem:[%s244 + $0xc] sm:$0xf] %v319
        %336 = vst [vmem:[%s244 + $0x10] sm:$0xf] %v320
        %337 = vst [vmem:[%s244 + $0x14] sm:$0xf] %v321
        %338 = vst [vmem:[%s244 + $0x18] sm:$0xf] %v322
        %339 = vst [vmem:[%s244 + $0x1c] sm:$0xf] %v323
        %s340 = smul.u32 8, %s14
        %p341 = scmp.lt.s32.totalorder %s340, 15
        %s342 = scalar_select %p341, %s340, 15
        %s343 = smul.addr %s342, 4
        %s344 = scalar_lea.vmem %s3, %s343
        // Predicated region
        $region74: #{resnet_block_forward.5} parent=68 // pred_check
          %p345 = pneg %p100
        $region75: #{resnet_block_forward.5} parent=68 // pred_check_branch
          %347 = sbr.rel (%p345) target = $region77
        $region76: #{resnet_block_forward.5} parent=68 // pred_region
          %s348 = smul.u32 8, %s14
        $region77: #{resnet_block_forward.5} parent=68 // pred_fallthru
          _
      $region69: #{resnet_block_forward.5} parent=5 // pred_fallthru
        _
      %p349 = scmp.le.s32.totalorder 2, %s9
      // Predicated region
      $region78: #{resnet_block_forward.5} parent=5 // pred_check
        %p350 = pneg %p349
      $region79: #{resnet_block_forward.5} parent=5 // pred_check_branch
        %352 = sbr.rel (%p350) target = $region81
      $region80: #{resnet_block_forward.5} parent=5 // pred_region
        %s353 = ssub.s32 %s9, 2
        // Predicated region
        $region82: #{resnet_block_forward.5} parent=80 // pred_check
          %p354 = pneg %p106
        $region83: #{resnet_block_forward.5} parent=80 // pred_check_branch
          %356 = sbr.rel (%p354) target = $region85
        $region84: #{resnet_block_forward.5} parent=80 // pred_region
          %s357 = smul.u32 8, %s15
          %p358 = scmp.lt.s32.totalorder %s357, 15
          %s359 = scalar_select %p358, %s357, 15
          %s360 = smul.addr %s359, 4
          %s361 = scalar_lea.vmem %s3, %s360
        $region85: #{resnet_block_forward.5} parent=80 // pred_fallthru
          _
      $region81: #{resnet_block_forward.5} parent=5 // pred_fallthru
        _
    $region6: #{resnet_block_forward.5} parent=1 // loop_footer
      %s13 = sadd.s32 1, %s9
    $region7: #{resnet_block_forward.5} parent=1 // loop_footer_branch
      %8 = sbr.rel target = $region3
    $region8: #{resnet_block_forward.5} parent=1 // loop_exit
      _

// kernel: resnet_block_forward.4
$region0: #{resnet_block_forward.4}
  #allocation0 [shape = 'u32[]', space=smem, size = 0x4, offset = 0x4, fixed_abs, tag = 'smem constant byte address 0x4 - core index']
  #allocation1 [shape = 'u32[144,128]{1,0:T(1,128)}', space=vmem, size = 0x12000, scoped, tag = 'internal scratch']
  %s0 = inlined_call_operand.vmem [shape: bf16[128,128], index: 0, kind: input, shape index: {}]
  %s1 = inlined_call_operand.vmem [shape: bf16[128,256], index: 1, kind: input, shape index: {}]
  %s2 = inlined_call_operand.vmem [shape: bf16[128,256], index: 2, kind: output, shape index: {0}]
  %s3 = inlined_call_operand.vmem [shape: f32[16,256], index: 3, kind: output, shape index: {1}]
  %4 = xla_tuple %s2, %s3
  %s5 = sld [smem:[#allocation0]]
  $region49: #{resnet_block_forward.4} parent=0
    _
  %s7 = ssub.s32 1, %s5
  %s8 = scalar_select 0, %s7, %s5
  loop: start=0, step=1, limit=4
  $region2: #{resnet_block_forward.4} parent=0 // loop_pre_header
    _
  $region3: #{resnet_block_forward.4} parent=0 // loop_header
    %s10 = sphi 0, %s14
    %p11 = scmp.ge.s32.totalorder %s10, 4
    %s20 = sphi 0, %s22
    %s23 = sphi 0, %s20
    %s24 = sphi 0, %s23
    %s40 = sphi 0, %s24
    %s44 = sphi 0, %s44
    %s46 = sphi 0, %s44
    %s47 = sphi 0, %s46
    %s61 = sphi 0, %s47
    %s67 = sphi 0, %s69
    %s70 = sphi 0, %s67
    %s71 = sphi 0, %s70
    %s87 = sphi 0, %s71
    %s93 = sphi 0, %s95
    %s96 = sphi 0, %s93
    %s97 = sphi 0, %s96
    %s113 = sphi 0, %s97
  $region4: #{resnet_block_forward.4} parent=0 // loop_header_branch
    %13 = sbr.rel (%p11) target = $region8
  $region5: #{resnet_block_forward.4} parent=0 // loop_body
    %s15 = ssub.s32 %s10, 1
    %s16 = ssub.s32 %s10, 2
    %s17 = sadd.s32 %s10, 1
    %s18 = ssub.s32 %s10, %s17
    %p19 = scmp.eq.s32.totalorder %s18, 0
    %s21 = sadd.s32 %s20, 1
    %s22 = scalar_select %p19, %s20, %s21
    %p25 = pneg %p19
    %p26 = scmp.eq.s32.totalorder %s10, 1
    %p27 = por %p25, %p26
    %p28 = scmp.ne.s32.totalorder %s20, %s23
    %p29 = scmp.eq.s32.totalorder %s10, 0
    %p30 = por %p28, %p29
    %p31 = scmp.ne.s32.totalorder %s20, %s23
    %p32 = scmp.eq.s32.totalorder %s15, 1
    %p33 = por %p31, %p32
    %p34 = scmp.ne.s32.totalorder %s23, %s24
    %p35 = scmp.eq.s32.totalorder %s15, 0
    %p36 = por %p34, %p35
    %p37 = scmp.ne.s32.totalorder %s23, %s24
    %p38 = scmp.eq.s32.totalorder %s16, 1
    %p39 = por %p37, %p38
    %p41 = scmp.ne.s32.totalorder %s24, %s40
    %p42 = scmp.eq.s32.totalorder %s16, 0
    %p43 = por %p41, %p42
    %s45 = sadd.s32 %s44, 1
    %p48 = scmp.eq.s32.totalorder %s10, 1
    %p49 = scmp.ne.s32.totalorder %s44, %s46
    %p50 = scmp.eq.s32.totalorder %s10, 0
    %p51 = por %p49, %p50
    %p52 = scmp.ne.s32.totalorder %s44, %s46
    %p53 = scmp.eq.s32.totalorder %s15, 1
    %p54 = por %p52, %p53
    %p55 = scmp.ne.s32.totalorder %s46, %s47
    %p56 = scmp.eq.s32.totalorder %s15, 0
    %p57 = por %p55, %p56
    %p58 = scmp.ne.s32.totalorder %s46, %s47
    %p59 = scmp.eq.s32.totalorder %s16, 1
    %p60 = por %p58, %p59
    %p62 = scmp.ne.s32.totalorder %s47, %s61
    %p63 = scmp.eq.s32.totalorder %s16, 0
    %p64 = por %p62, %p63
    %s65 = ssub.s32 %s10, %s17
    %p66 = scmp.eq.s32.totalorder %s65, 0
    %s68 = sadd.s32 %s67, 1
    %s69 = scalar_select %p66, %s67, %s68
    %p72 = pneg %p66
    %p73 = scmp.eq.s32.totalorder %s10, 1
    %p74 = por %p72, %p73
    %p75 = scmp.ne.s32.totalorder %s67, %s70
    %p76 = scmp.eq.s32.totalorder %s10, 0
    %p77 = por %p75, %p76
    %p78 = scmp.ne.s32.totalorder %s67, %s70
    %p79 = scmp.eq.s32.totalorder %s15, 1
    %p80 = por %p78, %p79
    %p81 = scmp.ne.s32.totalorder %s70, %s71
    %p82 = scmp.eq.s32.totalorder %s15, 0
    %p83 = por %p81, %p82
    %p84 = scmp.ne.s32.totalorder %s70, %s71
    %p85 = scmp.eq.s32.totalorder %s16, 1
    %p86 = por %p84, %p85
    %p88 = scmp.ne.s32.totalorder %s71, %s87
    %p89 = scmp.eq.s32.totalorder %s16, 0
    %p90 = por %p88, %p89
    %s91 = ssub.s32 %s10, %s17
    %p92 = scmp.eq.s32.totalorder %s91, 0
    %s94 = sadd.s32 %s93, 1
    %s95 = scalar_select %p92, %s93, %s94
    %p98 = pneg %p92
    %p99 = scmp.eq.s32.totalorder %s10, 1
    %p100 = por %p98, %p99
    %p101 = scmp.ne.s32.totalorder %s93, %s96
    %p102 = scmp.eq.s32.totalorder %s10, 0
    %p103 = por %p101, %p102
    %p104 = scmp.ne.s32.totalorder %s93, %s96
    %p105 = scmp.eq.s32.totalorder %s15, 1
    %p106 = por %p104, %p105
    %p107 = scmp.ne.s32.totalorder %s96, %s97
    %p108 = scmp.eq.s32.totalorder %s15, 0
    %p109 = por %p107, %p108
    %p110 = scmp.ne.s32.totalorder %s96, %s97
    %p111 = scmp.eq.s32.totalorder %s16, 1
    %p112 = por %p110, %p111
    %p114 = scmp.ne.s32.totalorder %s97, %s113
    %p115 = scmp.eq.s32.totalorder %s16, 0
    %p116 = por %p114, %p115
    %p117 = scmp.le.s32.totalorder 1, %s10
    %p118 = scmp.lt.s32.totalorder %s10, 3
    %p119 = pnand %p117, %p118
    %p120 = pneg %p119
    // Predicated region
    $region9: #{resnet_block_forward.4} parent=5 // pred_check
      _
    $region10: #{resnet_block_forward.4} parent=5 // pred_check_branch
      %122 = sbr.rel (%p119) target = $region12
    $region11: #{resnet_block_forward.4} parent=5 // pred_region
      %s123 = ssub.s32 %s10, 1
      // Predicated region
      $region13: #{resnet_block_forward.4} parent=11 // pred_check
        %p124 = pneg %p57
      $region14: #{resnet_block_forward.4} parent=11 // pred_check_branch
        %126 = sbr.rel (%p124) target = $region16
      $region15: #{resnet_block_forward.4} parent=11 // pred_region
        _
      $region16: #{resnet_block_forward.4} parent=11 // pred_fallthru
        _
    $region12: #{resnet_block_forward.4} parent=5 // pred_fallthru
      _
    %p127 = scmp.lt.s32.totalorder %s10, 2
    // Predicated region
    $region17: #{resnet_block_forward.4} parent=5 // pred_check
      %p128 = pneg %p127
    $region18: #{resnet_block_forward.4} parent=5 // pred_check_branch
      %130 = sbr.rel (%p128) target = $region20
    $region19: #{resnet_block_forward.4} parent=5 // pred_region
      // Predicated region
      $region21: #{resnet_block_forward.4} parent=19 // pred_check
        %p131 = pneg %p30
      $region22: #{resnet_block_forward.4} parent=19 // pred_check_branch
        %133 = sbr.rel (%p131) target = $region24
      $region23: #{resnet_block_forward.4} parent=19 // pred_region
        %s134 = smul.u32 8, %s10
        %p135 = scmp.lt.s32.totalorder %s134, 15
        %s136 = scalar_select %p135, %s134, 15
        %s137 = smul.addr %s136, 4
        %s138 = scalar_lea.vmem %s0, %s137
        %s139 = smul.u32 8, %s10
      $region24: #{resnet_block_forward.4} parent=19 // pred_fallthru
        _
    $region20: #{resnet_block_forward.4} parent=5 // pred_fallthru
      _
    %p140 = scmp.le.s32.totalorder 1, %s10
    %p141 = scmp.lt.s32.totalorder %s10, 3
    %p142 = pnand %p140, %p141
    %p143 = pneg %p142
    // Predicated region
    $region25: #{resnet_block_forward.4} parent=5 // pred_check
      _
    $region26: #{resnet_block_forward.4} parent=5 // pred_check_branch
      %145 = sbr.rel (%p142) target = $region28
    $region27: #{resnet_block_forward.4} parent=5 // pred_region
      %s146 = ssub.s32 %s10, 1
      %s147 = smul.u32 8, %s15
      %p148 = scmp.lt.s32.totalorder %s147, 15
      %s149 = scalar_select %p148, %s147, 15
      %s150 = smul.addr %s149, 4
      %s151 = scalar_lea.vmem %s0, %s150
      %p152 = pneg %p36
      %p153 = pneg %p33
      %p154 = pneg %p57
      %p155 = pneg %p54
      %p156 = pneg %p83
      %p157 = pneg %p80
      %s158 = smul.u32 8, %s15
      %p159 = scmp.lt.s32.totalorder %s158, 15
      %s160 = scalar_select %p159, %s158, 15
      %s161 = smul.addr %s160, 2
      %s162 = smul.addr %s161, 4
      %s163 = scalar_lea.vmem %s2, %s162
      %p164 = pneg %p109
      %p165 = pneg %p106
      %p166 = scmp.lt.s32.totalorder %s15, 1
      %s167 = scalar_select %p166, %s15, 1
      %s168 = smul.addr %s167, 2
      %s169 = smul.addr %s168, 8
      %s170 = scalar_lea.vmem %s3, %s169
      %s171 = smul.u32 8, %s15
      %p172 = scmp.lt.s32.totalorder %s171, 15
      %s173 = scalar_select %p172, %s171, 15
      %s174 = smul.addr %s173, 4
      %s175 = scalar_lea.vmem %s0, %s174
      %s176 = smul.u32 8, %s15
      %s177 = smul.u32 8, %s15
      %p178 = scmp.lt.s32.totalorder %s177, 15
      %s179 = scalar_select %p178, %s177, 15
      %s180 = smul.addr %s179, 2
      %s181 = smul.addr %s180, 4
      %s182 = scalar_lea.vmem %s2, %s181
      %s183 = smul.u32 8, %s15
      %p184 = scmp.lt.s32.totalorder %s15, 1
      %s185 = scalar_select %p184, %s15, 1
      %s186 = smul.addr %s185, 2
      %s187 = smul.addr %s186, 8
      %s188 = scalar_lea.vmem %s3, %s187
      %v190 = vld [vmem:[%s175] sm:$0xf]
      %v191 = vld [vmem:[%s175 + $0x4] sm:$0xf]
      %v192 = vld [vmem:[%s175 + $0x8] sm:$0xf]
      %v193 = vld [vmem:[%s175 + $0xc] sm:$0xf]
      %v194 = vld [vmem:[%s175 + $0x10] sm:$0xf]
      %v195 = vld [vmem:[%s175 + $0x14] sm:$0xf]
      %v196 = vld [vmem:[%s175 + $0x18] sm:$0xf]
      %v197 = vld [vmem:[%s175 + $0x1c] sm:$0xf]
      %v198 = vld [vmem:[%s1] sm:$0xff]
      %v199 = vld [vmem:[%s1 + $0x8] sm:$0xff]
      %v200 = vld [vmem:[%s1 + $0x10] sm:$0xff]
      %v201 = vld [vmem:[%s1 + $0x18] sm:$0xff]
      %v202 = vld [vmem:[%s1 + $0x20] sm:$0xff]
      %v203 = vld [vmem:[%s1 + $0x28] sm:$0xff]
      %v204 = vld [vmem:[%s1 + $0x30] sm:$0xff]
      %v205 = vld [vmem:[%s1 + $0x38] sm:$0xff]
      %v206 = vld [vmem:[%s1 + $0x40] sm:$0xff]
      %v207 = vld [vmem:[%s1 + $0x48] sm:$0xff]
      %v208 = vld [vmem:[%s1 + $0x50] sm:$0xff]
      %v209 = vld [vmem:[%s1 + $0x58] sm:$0xff]
      %v210 = vld [vmem:[%s1 + $0x60] sm:$0xff]
      %v211 = vld [vmem:[%s1 + $0x68] sm:$0xff]
      %v212 = vld [vmem:[%s1 + $0x70] sm:$0xff]
      %v213 = vld [vmem:[%s1 + $0x78] sm:$0xff]
      %v222 = vunpack.c.l.b16 %v190
      %v223 = vunpack.c.l.b16 %v191
      %v224 = vunpack.c.l.b16 %v192
      %v225 = vunpack.c.l.b16 %v193
      %v226 = vunpack.c.l.b16 %v194
      %v227 = vunpack.c.l.b16 %v195
      %v228 = vunpack.c.l.b16 %v196
      %v229 = vunpack.c.l.b16 %v197
      %v230 = vpack.c.b16 %v223, %v222
      %v231 = vpack.c.b16 %v225, %v224
      %v232 = vpack.c.b16 %v227, %v226
      %v233 = vpack.c.b16 %v229, %v228
      %v254 = vunpack.c.l.b16 %v198
      %v255 = vunpack.c.h.b16 %v198
      %v256 = vunpack.c.l.b16 %v199
      %v257 = vunpack.c.h.b16 %v199
      %v258 = vunpack.c.l.b16 %v200
      %v259 = vunpack.c.h.b16 %v200
      %v260 = vunpack.c.l.b16 %v201
      %v261 = vunpack.c.h.b16 %v201
      %v262 = vunpack.c.l.b16 %v202
      %v263 = vunpack.c.h.b16 %v202
      %v264 = vunpack.c.l.b16 %v203
      %v265 = vunpack.c.h.b16 %v203
      %v266 = vunpack.c.l.b16 %v204
      %v267 = vunpack.c.h.b16 %v204
      %v268 = vunpack.c.l.b16 %v205
      %v269 = vunpack.c.h.b16 %v205
      %v270 = vunpack.c.l.b16 %v206
      %v271 = vunpack.c.h.b16 %v206
      %v272 = vunpack.c.l.b16 %v207
      %v273 = vunpack.c.h.b16 %v207
      %v274 = vunpack.c.l.b16 %v208
      %v275 = vunpack.c.h.b16 %v208
      %v276 = vunpack.c.l.b16 %v209
      %v277 = vunpack.c.h.b16 %v209
      %v278 = vunpack.c.l.b16 %v210
      %v279 = vunpack.c.h.b16 %v210
      %v280 = vunpack.c.l.b16 %v211
      %v281 = vunpack.c.h.b16 %v211
      %v282 = vunpack.c.l.b16 %v212
      %v283 = vunpack.c.h.b16 %v212
      %v284 = vunpack.c.l.b16 %v213
      %v285 = vunpack.c.h.b16 %v213
      %v286 = vpack.c.b16 %v256, %v254
      %v287 = vpack.c.b16 %v257, %v255
      %v288 = vpack.c.b16 %v260, %v258
      %v289 = vpack.c.b16 %v261, %v259
      %v290 = vpack.c.b16 %v264, %v262
      %v291 = vpack.c.b16 %v265, %v263
      %v292 = vpack.c.b16 %v268, %v266
      %v293 = vpack.c.b16 %v269, %v267
      %v294 = vpack.c.b16 %v272, %v270
      %v295 = vpack.c.b16 %v273, %v271
      %v296 = vpack.c.b16 %v276, %v274
      %v297 = vpack.c.b16 %v277, %v275
      %v298 = vpack.c.b16 %v280, %v278
      %v299 = vpack.c.b16 %v281, %v279
      %v300 = vpack.c.b16 %v284, %v282
      %v301 = vpack.c.b16 %v285, %v283
      %318 = vmatprep.subr.bf16.mxu0 %v301
      %319 = vmatpush1.bf16.msra.mxu0 %v300
      %320 = vmatprep.subr.bf16.mxu0 %v299
      %321 = vmatpush1.bf16.msra.mxu0 %v298
      %322 = vmatprep.subr.bf16.mxu0 %v297
      %323 = vmatpush1.bf16.msra.mxu0 %v296
      %324 = vmatprep.subr.bf16.mxu0 %v295
      %325 = vmatpush1.bf16.msra.mxu0 %v294
      %326 = vmatprep.subr.bf16.mxu0 %v293
      %327 = vmatpush1.bf16.msra.mxu0 %v292
      %328 = vmatprep.subr.bf16.mxu0 %v291
      %329 = vmatpush1.bf16.msra.mxu0 %v290
      %330 = vmatprep.subr.bf16.mxu0 %v289
      %331 = vmatpush1.bf16.msra.mxu0 %v288
      %332 = vmatprep.subr.bf16.mxu0 %v287
      %333 = vmatpush1.bf16.msra.mxu0 %v286
      %334 = vmatprep.subr.bf16.mxu0 0
      %335 = vmatpush2.bf16.msra.mxu0 0
      %336 = vmatprep.subr.bf16.mxu0 0
      %337 = vmatpush2.bf16.msra.mxu0 0
      %338 = vmatprep.subr.bf16.mxu0 0
      %339 = vmatpush2.bf16.msra.mxu0 0
      %340 = vmatprep.subr.bf16.mxu0 0
      %341 = vmatpush2.bf16.msra.mxu0 0
      %342 = vmatprep.subr.bf16.mxu0 0
      %343 = vmatpush2.bf16.msra.mxu0 0
      %344 = vmatprep.subr.bf16.mxu0 0
      %345 = vmatpush2.bf16.msra.mxu0 0
      %346 = vmatprep.subr.bf16.mxu0 0
      %347 = vmatpush2.bf16.msra.mxu0 0
      %348 = vmatprep.subr.bf16.mxu0 0
      %349 = vmatpush2.bf16.msra.mxu0 0
      %350 = vmatprep.mubr.bf16.mxu0 0
      %351 = vmatmul.mubr.bf16.gmra.mxu0 %v230
      %v352 = vpop.f32.mrf.mxu0
      %v353 = vadd.f32 0.0, %v352
      %v354 = vpop.f32.mrf.mxu0
      %v355 = vadd.f32 0.0, %v354
      %v356 = vpop.f32.mrf.mxu0
      %v357 = vadd.f32 0.0, %v356
      %v358 = vpop.f32.mrf.mxu0
      %v359 = vadd.f32 0.0, %v358
      %360 = vmatprep.mubr.bf16.mxu0 0
      %361 = vmatmul.mubr.bf16.gmra.mxu0 %v231
      %v362 = vpop.f32.mrf.mxu0
      %v363 = vadd.f32 0.0, %v362
      %v364 = vpop.f32.mrf.mxu0
      %v365 = vadd.f32 0.0, %v364
      %v366 = vpop.f32.mrf.mxu0
      %v367 = vadd.f32 0.0, %v366
      %v368 = vpop.f32.mrf.mxu0
      %v369 = vadd.f32 0.0, %v368
      %370 = vmatprep.mubr.bf16.mxu0 0
      %371 = vmatmul.mubr.bf16.gmra.mxu0 %v232
      %v372 = vpop.f32.mrf.mxu0
      %v373 = vadd.f32 0.0, %v372
      %v374 = vpop.f32.mrf.mxu0
      %v375 = vadd.f32 0.0, %v374
      %v376 = vpop.f32.mrf.mxu0
      %v377 = vadd.f32 0.0, %v376
      %v378 = vpop.f32.mrf.mxu0
      %v379 = vadd.f32 0.0, %v378
      %380 = vmatprep.mubr.bf16.mxu0 0
      %381 = vmatmul.mubr.bf16.gmra.mxu0 %v233
      %v382 = vpop.f32.mrf.mxu0
      %v383 = vadd.f32 0.0, %v382
      %v384 = vpop.f32.mrf.mxu0
      %v385 = vadd.f32 0.0, %v384
      %v386 = vpop.f32.mrf.mxu0
      %v387 = vadd.f32 0.0, %v386
      %v388 = vpop.f32.mrf.mxu0
      %v389 = vadd.f32 0.0, %v388
      %390 = vdwg.mxu0
      %v391 = vpack.c.bf16 %v357, %v353
      %v392 = vpack.c.bf16 %v359, %v355
      %v393 = vpack.c.bf16 %v367, %v363
      %v394 = vpack.c.bf16 %v369, %v365
      %v395 = vpack.c.bf16 %v377, %v373
      %v396 = vpack.c.bf16 %v379, %v375
      %v397 = vpack.c.bf16 %v387, %v383
      %v398 = vpack.c.bf16 %v389, %v385
      %v407 = vunpack.c.l.b16 %v391
      %v408 = vunpack.c.l.b16 %v392
      %v409 = vunpack.c.h.b16 %v391
      %v410 = vunpack.c.h.b16 %v392
      %v411 = vunpack.c.l.b16 %v393
      %v412 = vunpack.c.l.b16 %v394
      %v413 = vunpack.c.h.b16 %v393
      %v414 = vunpack.c.h.b16 %v394
      %v415 = vunpack.c.l.b16 %v395
      %v416 = vunpack.c.l.b16 %v396
      %v417 = vunpack.c.h.b16 %v395
      %v418 = vunpack.c.h.b16 %v396
      %v419 = vunpack.c.l.b16 %v397
      %v420 = vunpack.c.l.b16 %v398
      %v421 = vunpack.c.h.b16 %v397
      %v422 = vunpack.c.h.b16 %v398
      %v423 = vpack.c.b16 %v408, %v407
      %v424 = vpack.c.b16 %v410, %v409
      %v425 = vpack.c.b16 %v412, %v411
      %v426 = vpack.c.b16 %v414, %v413
      %v427 = vpack.c.b16 %v416, %v415
      %v428 = vpack.c.b16 %v418, %v417
      %v429 = vpack.c.b16 %v420, %v419
      %v430 = vpack.c.b16 %v422, %v421
      %439 = vst [vmem:[%s182] sm:$0xff] %v423
      %440 = vst [vmem:[%s182 + $0x8] sm:$0xff] %v424
      %441 = vst [vmem:[%s182 + $0x10] sm:$0xff] %v425
      %442 = vst [vmem:[%s182 + $0x18] sm:$0xff] %v426
      %443 = vst [vmem:[%s182 + $0x20] sm:$0xff] %v427
      %444 = vst [vmem:[%s182 + $0x28] sm:$0xff] %v428
      %445 = vst [vmem:[%s182 + $0x30] sm:$0xff] %v429
      %446 = vst [vmem:[%s182 + $0x38] sm:$0xff] %v430
      %v447 = vadd.f32 %v353, %v357
      %v448 = vadd.f32 %v447, %v363
      %v449 = vadd.f32 %v448, %v367
      %v450 = vadd.f32 %v449, %v373
      %v451 = vadd.f32 %v450, %v377
      %v452 = vadd.f32 %v451, %v383
      %v453 = vadd.f32 %v452, %v387
      %v454 = vrot.slane %v453, 4
      %v455 = vadd.f32 %v453, %v454
      %v456 = vrot.slane %v455, 2
      %v457 = vadd.f32 %v455, %v456
      %v458 = vrot.slane %v457, 1
      %v459 = vadd.f32 %v457, %v458
      %v460 = vadd.f32 %v355, %v359
      %v461 = vadd.f32 %v460, %v365
      %v462 = vadd.f32 %v461, %v369
      %v463 = vadd.f32 %v462, %v375
      %v464 = vadd.f32 %v463, %v379
      %v465 = vadd.f32 %v464, %v385
      %v466 = vadd.f32 %v465, %v389
      %v467 = vrot.slane %v466, 4
      %v468 = vadd.f32 %v466, %v467
      %v469 = vrot.slane %v468, 2
      %v470 = vadd.f32 %v468, %v469
      %v471 = vrot.slane %v470, 1
      %v472 = vadd.f32 %v470, %v471
      %v473 = vmul.f32 %v353, %v353
      %v474 = vmul.f32 %v355, %v355
      %v475 = vmul.f32 %v357, %v357
      %v476 = vmul.f32 %v359, %v359
      %v477 = vmul.f32 %v363, %v363
      %v478 = vmul.f32 %v365, %v365
      %v479 = vmul.f32 %v367, %v367
      %v480 = vmul.f32 %v369, %v369
      %v481 = vmul.f32 %v373, %v373
      %v482 = vmul.f32 %v375, %v375
      %v483 = vmul.f32 %v377, %v377
      %v484 = vmul.f32 %v379, %v379
      %v485 = vmul.f32 %v383, %v383
      %v486 = vmul.f32 %v385, %v385
      %v487 = vmul.f32 %v387, %v387
      %v488 = vmul.f32 %v389, %v389
      %v489 = vadd.f32 %v473, %v475
      %v490 = vadd.f32 %v489, %v477
      %v491 = vadd.f32 %v490, %v479
      %v492 = vadd.f32 %v491, %v481
      %v493 = vadd.f32 %v492, %v483
      %v494 = vadd.f32 %v493, %v485
      %v495 = vadd.f32 %v494, %v487
      %v496 = vrot.slane %v495, 4
      %v497 = vadd.f32 %v495, %v496
      %v498 = vrot.slane %v497, 2
      %v499 = vadd.f32 %v497, %v498
      %v500 = vrot.slane %v499, 1
      %v501 = vadd.f32 %v499, %v500
      %v502 = vadd.f32 %v474, %v476
      %v503 = vadd.f32 %v502, %v478
      %v504 = vadd.f32 %v503, %v480
      %v505 = vadd.f32 %v504, %v482
      %v506 = vadd.f32 %v505, %v484
      %v507 = vadd.f32 %v506, %v486
      %v508 = vadd.f32 %v507, %v488
      %v509 = vrot.slane %v508, 4
      %v510 = vadd.f32 %v508, %v509
      %v511 = vrot.slane %v510, 2
      %v512 = vadd.f32 %v510, %v511
      %v513 = vrot.slane %v512, 1
      %v514 = vadd.f32 %v512, %v513
      %vm515 = vcmask 1040384
      %v516 = vsel %vm515, %v459, %v501
      %v517 = vsel %vm515, %v472, %v514
      %vm518 = vcmask 1041408
      %v519 = vsel %vm518, %v516, 0.0
      %v520 = vsel %vm518, %v517, 0.0
      %521 = vst [vmem:[%s188] sm:$0xff] %v519
      %522 = vst [vmem:[%s188 + $0x8] sm:$0xff] %v520
      %s523 = smul.u32 8, %s15
      %p524 = scmp.lt.s32.totalorder %s523, 15
      %s525 = scalar_select %p524, %s523, 15
      %s526 = smul.addr %s525, 2
      %s527 = smul.addr %s526, 4
      %s528 = scalar_lea.vmem %s2, %s527
      %p529 = scmp.lt.s32.totalorder %s15, 1
      %s530 = scalar_select %p529, %s15, 1
      %s531 = smul.addr %s530, 2
      %s532 = smul.addr %s531, 8
      %s533 = scalar_lea.vmem %s3, %s532
      // Predicated region
      $region29: #{resnet_block_forward.4} parent=27 // pred_check
        %p534 = pneg %p80
      $region30: #{resnet_block_forward.4} parent=27 // pred_check_branch
        %536 = sbr.rel (%p534) target = $region32
      $region31: #{resnet_block_forward.4} parent=27 // pred_region
        %s537 = smul.u32 8, %s15
      $region32: #{resnet_block_forward.4} parent=27 // pred_fallthru
        _
      // Predicated region
      $region33: #{resnet_block_forward.4} parent=27 // pred_check
        %p538 = pneg %p106
      $region34: #{resnet_block_forward.4} parent=27 // pred_check_branch
        %540 = sbr.rel (%p538) target = $region36
      $region35: #{resnet_block_forward.4} parent=27 // pred_region
        _
      $region36: #{resnet_block_forward.4} parent=27 // pred_fallthru
        _
    $region28: #{resnet_block_forward.4} parent=5 // pred_fallthru
      _
    %p541 = scmp.le.s32.totalorder 2, %s10
    // Predicated region
    $region37: #{resnet_block_forward.4} parent=5 // pred_check
      %p542 = pneg %p541
    $region38: #{resnet_block_forward.4} parent=5 // pred_check_branch
      %544 = sbr.rel (%p542) target = $region40
    $region39: #{resnet_block_forward.4} parent=5 // pred_region
      %s545 = ssub.s32 %s10, 2
      // Predicated region
      $region41: #{resnet_block_forward.4} parent=39 // pred_check
        %p546 = pneg %p86
      $region42: #{resnet_block_forward.4} parent=39 // pred_check_branch
        %548 = sbr.rel (%p546) target = $region44
      $region43: #{resnet_block_forward.4} parent=39 // pred_region
        %s549 = smul.u32 8, %s16
        %p550 = scmp.lt.s32.totalorder %s549, 15
        %s551 = scalar_select %p550, %s549, 15
        %s552 = smul.addr %s551, 2
        %s553 = smul.addr %s552, 4
        %s554 = scalar_lea.vmem %s2, %s553
      $region44: #{resnet_block_forward.4} parent=39 // pred_fallthru
        _
      // Predicated region
      $region45: #{resnet_block_forward.4} parent=39 // pred_check
        %p555 = pneg %p112
      $region46: #{resnet_block_forward.4} parent=39 // pred_check_branch
        %557 = sbr.rel (%p555) target = $region48
      $region47: #{resnet_block_forward.4} parent=39 // pred_region
        %p558 = scmp.lt.s32.totalorder %s16, 1
        %s559 = scalar_select %p558, %s16, 1
        %s560 = smul.addr %s559, 2
        %s561 = smul.addr %s560, 8
        %s562 = scalar_lea.vmem %s3, %s561
      $region48: #{resnet_block_forward.4} parent=39 // pred_fallthru
        _
    $region40: #{resnet_block_forward.4} parent=5 // pred_fallthru
      _
  $region6: #{resnet_block_forward.4} parent=0 // loop_footer
    %s14 = sadd.s32 1, %s10
  $region7: #{resnet_block_forward.4} parent=0 // loop_footer_branch
    %9 = sbr.rel target = $region3
  $region8: #{resnet_block_forward.4} parent=0 // loop_exit
    _

// kernel: resnet_block_forward.6
$region0: #{resnet_block_forward.6}
  #allocation0 [shape = 'u32[]', space=smem, size = 0x4, offset = 0x4, fixed_abs, tag = 'smem constant byte address 0x4 - core index']
  #allocation1 [shape = 'u32[144,128]{1,0:T(1,128)}', space=vmem, size = 0x12000, scoped, tag = 'internal scratch']
  %s0 = inlined_call_operand.vmem [shape: bf16[128,128], index: 0, kind: input, shape index: {}]
  %s1 = inlined_call_operand.vmem [shape: bf16[128,128], index: 1, kind: input, shape index: {}]
  %s2 = inlined_call_operand.vmem [shape: bf16[128,128], index: 2, kind: output, shape index: {0}]
  %s3 = inlined_call_operand.vmem [shape: f32[16,128], index: 3, kind: output, shape index: {1}]
  %4 = xla_tuple %s2, %s3
  %s5 = sld [smem:[#allocation0]]
  $region49: #{resnet_block_forward.6} parent=0
    _
  %s7 = ssub.s32 1, %s5
  %s8 = scalar_select 0, %s7, %s5
  loop: start=0, step=1, limit=4
  $region2: #{resnet_block_forward.6} parent=0 // loop_pre_header
    _
  $region3: #{resnet_block_forward.6} parent=0 // loop_header
    %s10 = sphi 0, %s14
    %p11 = scmp.ge.s32.totalorder %s10, 4
    %s20 = sphi 0, %s22
    %s23 = sphi 0, %s20
    %s24 = sphi 0, %s23
    %s40 = sphi 0, %s24
    %s44 = sphi 0, %s44
    %s46 = sphi 0, %s44
    %s47 = sphi 0, %s46
    %s61 = sphi 0, %s47
    %s67 = sphi 0, %s69
    %s70 = sphi 0, %s67
    %s71 = sphi 0, %s70
    %s87 = sphi 0, %s71
    %s93 = sphi 0, %s95
    %s96 = sphi 0, %s93
    %s97 = sphi 0, %s96
    %s113 = sphi 0, %s97
  $region4: #{resnet_block_forward.6} parent=0 // loop_header_branch
    %13 = sbr.rel (%p11) target = $region8
  $region5: #{resnet_block_forward.6} parent=0 // loop_body
    %s15 = ssub.s32 %s10, 1
    %s16 = ssub.s32 %s10, 2
    %s17 = sadd.s32 %s10, 1
    %s18 = ssub.s32 %s10, %s17
    %p19 = scmp.eq.s32.totalorder %s18, 0
    %s21 = sadd.s32 %s20, 1
    %s22 = scalar_select %p19, %s20, %s21
    %p25 = pneg %p19
    %p26 = scmp.eq.s32.totalorder %s10, 1
    %p27 = por %p25, %p26
    %p28 = scmp.ne.s32.totalorder %s20, %s23
    %p29 = scmp.eq.s32.totalorder %s10, 0
    %p30 = por %p28, %p29
    %p31 = scmp.ne.s32.totalorder %s20, %s23
    %p32 = scmp.eq.s32.totalorder %s15, 1
    %p33 = por %p31, %p32
    %p34 = scmp.ne.s32.totalorder %s23, %s24
    %p35 = scmp.eq.s32.totalorder %s15, 0
    %p36 = por %p34, %p35
    %p37 = scmp.ne.s32.totalorder %s23, %s24
    %p38 = scmp.eq.s32.totalorder %s16, 1
    %p39 = por %p37, %p38
    %p41 = scmp.ne.s32.totalorder %s24, %s40
    %p42 = scmp.eq.s32.totalorder %s16, 0
    %p43 = por %p41, %p42
    %s45 = sadd.s32 %s44, 1
    %p48 = scmp.eq.s32.totalorder %s10, 1
    %p49 = scmp.ne.s32.totalorder %s44, %s46
    %p50 = scmp.eq.s32.totalorder %s10, 0
    %p51 = por %p49, %p50
    %p52 = scmp.ne.s32.totalorder %s44, %s46
    %p53 = scmp.eq.s32.totalorder %s15, 1
    %p54 = por %p52, %p53
    %p55 = scmp.ne.s32.totalorder %s46, %s47
    %p56 = scmp.eq.s32.totalorder %s15, 0
    %p57 = por %p55, %p56
    %p58 = scmp.ne.s32.totalorder %s46, %s47
    %p59 = scmp.eq.s32.totalorder %s16, 1
    %p60 = por %p58, %p59
    %p62 = scmp.ne.s32.totalorder %s47, %s61
    %p63 = scmp.eq.s32.totalorder %s16, 0
    %p64 = por %p62, %p63
    %s65 = ssub.s32 %s10, %s17
    %p66 = scmp.eq.s32.totalorder %s65, 0
    %s68 = sadd.s32 %s67, 1
    %s69 = scalar_select %p66, %s67, %s68
    %p72 = pneg %p66
    %p73 = scmp.eq.s32.totalorder %s10, 1
    %p74 = por %p72, %p73
    %p75 = scmp.ne.s32.totalorder %s67, %s70
    %p76 = scmp.eq.s32.totalorder %s10, 0
    %p77 = por %p75, %p76
    %p78 = scmp.ne.s32.totalorder %s67, %s70
    %p79 = scmp.eq.s32.totalorder %s15, 1
    %p80 = por %p78, %p79
    %p81 = scmp.ne.s32.totalorder %s70, %s71
    %p82 = scmp.eq.s32.totalorder %s15, 0
    %p83 = por %p81, %p82
    %p84 = scmp.ne.s32.totalorder %s70, %s71
    %p85 = scmp.eq.s32.totalorder %s16, 1
    %p86 = por %p84, %p85
    %p88 = scmp.ne.s32.totalorder %s71, %s87
    %p89 = scmp.eq.s32.totalorder %s16, 0
    %p90 = por %p88, %p89
    %s91 = ssub.s32 %s10, %s17
    %p92 = scmp.eq.s32.totalorder %s91, 0
    %s94 = sadd.s32 %s93, 1
    %s95 = scalar_select %p92, %s93, %s94
    %p98 = pneg %p92
    %p99 = scmp.eq.s32.totalorder %s10, 1
    %p100 = por %p98, %p99
    %p101 = scmp.ne.s32.totalorder %s93, %s96
    %p102 = scmp.eq.s32.totalorder %s10, 0
    %p103 = por %p101, %p102
    %p104 = scmp.ne.s32.totalorder %s93, %s96
    %p105 = scmp.eq.s32.totalorder %s15, 1
    %p106 = por %p104, %p105
    %p107 = scmp.ne.s32.totalorder %s96, %s97
    %p108 = scmp.eq.s32.totalorder %s15, 0
    %p109 = por %p107, %p108
    %p110 = scmp.ne.s32.totalorder %s96, %s97
    %p111 = scmp.eq.s32.totalorder %s16, 1
    %p112 = por %p110, %p111
    %p114 = scmp.ne.s32.totalorder %s97, %s113
    %p115 = scmp.eq.s32.totalorder %s16, 0
    %p116 = por %p114, %p115
    %p117 = scmp.le.s32.totalorder 1, %s10
    %p118 = scmp.lt.s32.totalorder %s10, 3
    %p119 = pnand %p117, %p118
    %p120 = pneg %p119
    // Predicated region
    $region9: #{resnet_block_forward.6} parent=5 // pred_check
      _
    $region10: #{resnet_block_forward.6} parent=5 // pred_check_branch
      %122 = sbr.rel (%p119) target = $region12
    $region11: #{resnet_block_forward.6} parent=5 // pred_region
      %s123 = ssub.s32 %s10, 1
      // Predicated region
      $region13: #{resnet_block_forward.6} parent=11 // pred_check
        %p124 = pneg %p57
      $region14: #{resnet_block_forward.6} parent=11 // pred_check_branch
        %126 = sbr.rel (%p124) target = $region16
      $region15: #{resnet_block_forward.6} parent=11 // pred_region
        _
      $region16: #{resnet_block_forward.6} parent=11 // pred_fallthru
        _
    $region12: #{resnet_block_forward.6} parent=5 // pred_fallthru
      _
    %p127 = scmp.lt.s32.totalorder %s10, 2
    // Predicated region
    $region17: #{resnet_block_forward.6} parent=5 // pred_check
      %p128 = pneg %p127
    $region18: #{resnet_block_forward.6} parent=5 // pred_check_branch
      %130 = sbr.rel (%p128) target = $region20
    $region19: #{resnet_block_forward.6} parent=5 // pred_region
      // Predicated region
      $region21: #{resnet_block_forward.6} parent=19 // pred_check
        %p131 = pneg %p30
      $region22: #{resnet_block_forward.6} parent=19 // pred_check_branch
        %133 = sbr.rel (%p131) target = $region24
      $region23: #{resnet_block_forward.6} parent=19 // pred_region
        %s134 = smul.u32 8, %s10
        %p135 = scmp.lt.s32.totalorder %s134, 15
        %s136 = scalar_select %p135, %s134, 15
        %s137 = smul.addr %s136, 4
        %s138 = scalar_lea.vmem %s0, %s137
        %s139 = smul.u32 8, %s10
      $region24: #{resnet_block_forward.6} parent=19 // pred_fallthru
        _
    $region20: #{resnet_block_forward.6} parent=5 // pred_fallthru
      _
    %p140 = scmp.le.s32.totalorder 1, %s10
    %p141 = scmp.lt.s32.totalorder %s10, 3
    %p142 = pnand %p140, %p141
    %p143 = pneg %p142
    // Predicated region
    $region25: #{resnet_block_forward.6} parent=5 // pred_check
      _
    $region26: #{resnet_block_forward.6} parent=5 // pred_check_branch
      %145 = sbr.rel (%p142) target = $region28
    $region27: #{resnet_block_forward.6} parent=5 // pred_region
      %s146 = ssub.s32 %s10, 1
      %s147 = smul.u32 8, %s15
      %p148 = scmp.lt.s32.totalorder %s147, 15
      %s149 = scalar_select %p148, %s147, 15
      %s150 = smul.addr %s149, 4
      %s151 = scalar_lea.vmem %s0, %s150
      %p152 = pneg %p36
      %p153 = pneg %p33
      %p154 = pneg %p57
      %p155 = pneg %p54
      %p156 = pneg %p83
      %p157 = pneg %p80
      %s158 = smul.u32 8, %s15
      %p159 = scmp.lt.s32.totalorder %s158, 15
      %s160 = scalar_select %p159, %s158, 15
      %s161 = smul.addr %s160, 4
      %s162 = scalar_lea.vmem %s2, %s161
      %p163 = pneg %p109
      %p164 = pneg %p106
      %p165 = scmp.lt.s32.totalorder %s15, 1
      %s166 = scalar_select %p165, %s15, 1
      %s167 = smul.addr %s166, 8
      %s168 = scalar_lea.vmem %s3, %s167
      %s169 = smul.u32 8, %s15
      %p170 = scmp.lt.s32.totalorder %s169, 15
      %s171 = scalar_select %p170, %s169, 15
      %s172 = smul.addr %s171, 4
      %s173 = scalar_lea.vmem %s0, %s172
      %s174 = smul.u32 8, %s15
      %s175 = smul.u32 8, %s15
      %p176 = scmp.lt.s32.totalorder %s175, 15
      %s177 = scalar_select %p176, %s175, 15
      %s178 = smul.addr %s177, 4
      %s179 = scalar_lea.vmem %s2, %s178
      %s180 = smul.u32 8, %s15
      %p181 = scmp.lt.s32.totalorder %s15, 1
      %s182 = scalar_select %p181, %s15, 1
      %s183 = smul.addr %s182, 8
      %s184 = scalar_lea.vmem %s3, %s183
      %v186 = vld [vmem:[%s173] sm:$0xf]
      %v187 = vld [vmem:[%s173 + $0x4] sm:$0xf]
      %v188 = vld [vmem:[%s173 + $0x8] sm:$0xf]
      %v189 = vld [vmem:[%s173 + $0xc] sm:$0xf]
      %v190 = vld [vmem:[%s173 + $0x10] sm:$0xf]
      %v191 = vld [vmem:[%s173 + $0x14] sm:$0xf]
      %v192 = vld [vmem:[%s173 + $0x18] sm:$0xf]
      %v193 = vld [vmem:[%s173 + $0x1c] sm:$0xf]
      %v194 = vld [vmem:[%s1] sm:$0xf]
      %v195 = vld [vmem:[%s1 + $0x4] sm:$0xf]
      %v196 = vld [vmem:[%s1 + $0x8] sm:$0xf]
      %v197 = vld [vmem:[%s1 + $0xc] sm:$0xf]
      %v198 = vld [vmem:[%s1 + $0x10] sm:$0xf]
      %v199 = vld [vmem:[%s1 + $0x14] sm:$0xf]
      %v200 = vld [vmem:[%s1 + $0x18] sm:$0xf]
      %v201 = vld [vmem:[%s1 + $0x1c] sm:$0xf]
      %v202 = vld [vmem:[%s1 + $0x20] sm:$0xf]
      %v203 = vld [vmem:[%s1 + $0x24] sm:$0xf]
      %v204 = vld [vmem:[%s1 + $0x28] sm:$0xf]
      %v205 = vld [vmem:[%s1 + $0x2c] sm:$0xf]
      %v206 = vld [vmem:[%s1 + $0x30] sm:$0xf]
      %v207 = vld [vmem:[%s1 + $0x34] sm:$0xf]
      %v208 = vld [vmem:[%s1 + $0x38] sm:$0xf]
      %v209 = vld [vmem:[%s1 + $0x3c] sm:$0xf]
      %v218 = vunpack.c.l.b16 %v186
      %v219 = vunpack.c.l.b16 %v187
      %v220 = vunpack.c.l.b16 %v188
      %v221 = vunpack.c.l.b16 %v189
      %v222 = vunpack.c.l.b16 %v190
      %v223 = vunpack.c.l.b16 %v191
      %v224 = vunpack.c.l.b16 %v192
      %v225 = vunpack.c.l.b16 %v193
      %v226 = vpack.c.b16 %v219, %v218
      %v227 = vpack.c.b16 %v221, %v220
      %v228 = vpack.c.b16 %v223, %v222
      %v229 = vpack.c.b16 %v225, %v224
      %v250 = vunpack.c.l.b16 %v194
      %v251 = vunpack.c.l.b16 %v195
      %v252 = vunpack.c.l.b16 %v196
      %v253 = vunpack.c.l.b16 %v197
      %v254 = vunpack.c.l.b16 %v198
      %v255 = vunpack.c.l.b16 %v199
      %v256 = vunpack.c.l.b16 %v200
      %v257 = vunpack.c.l.b16 %v201
      %v258 = vunpack.c.l.b16 %v202
      %v259 = vunpack.c.l.b16 %v203
      %v260 = vunpack.c.l.b16 %v204
      %v261 = vunpack.c.l.b16 %v205
      %v262 = vunpack.c.l.b16 %v206
      %v263 = vunpack.c.l.b16 %v207
      %v264 = vunpack.c.l.b16 %v208
      %v265 = vunpack.c.l.b16 %v209
      %v266 = vpack.c.b16 %v251, %v250
      %v267 = vpack.c.b16 %v253, %v252
      %v268 = vpack.c.b16 %v255, %v254
      %v269 = vpack.c.b16 %v257, %v256
      %v270 = vpack.c.b16 %v259, %v258
      %v271 = vpack.c.b16 %v261, %v260
      %v272 = vpack.c.b16 %v263, %v262
      %v273 = vpack.c.b16 %v265, %v264
      %282 = vmatprep.subr.bf16.mxu0 0
      %283 = vmatpush1.bf16.msra.mxu0 %v273
      %284 = vmatprep.subr.bf16.mxu0 0
      %285 = vmatpush1.bf16.msra.mxu0 %v272
      %286 = vmatprep.subr.bf16.mxu0 0
      %287 = vmatpush1.bf16.msra.mxu0 %v271
      %288 = vmatprep.subr.bf16.mxu0 0
      %289 = vmatpush1.bf16.msra.mxu0 %v270
      %290 = vmatprep.subr.bf16.mxu0 0
      %291 = vmatpush1.bf16.msra.mxu0 %v269
      %292 = vmatprep.subr.bf16.mxu0 0
      %293 = vmatpush1.bf16.msra.mxu0 %v268
      %294 = vmatprep.subr.bf16.mxu0 0
      %295 = vmatpush1.bf16.msra.mxu0 %v267
      %296 = vmatprep.subr.bf16.mxu0 0
      %297 = vmatpush1.bf16.msra.mxu0 %v266
      %298 = vmatprep.subr.bf16.mxu0 0
      %299 = vmatpush2.bf16.msra.mxu0 0
      %300 = vmatprep.subr.bf16.mxu0 0
      %301 = vmatpush2.bf16.msra.mxu0 0
      %302 = vmatprep.subr.bf16.mxu0 0
      %303 = vmatpush2.bf16.msra.mxu0 0
      %304 = vmatprep.subr.bf16.mxu0 0
      %305 = vmatpush2.bf16.msra.mxu0 0
      %306 = vmatprep.subr.bf16.mxu0 0
      %307 = vmatpush2.bf16.msra.mxu0 0
      %308 = vmatprep.subr.bf16.mxu0 0
      %309 = vmatpush2.bf16.msra.mxu0 0
      %310 = vmatprep.subr.bf16.mxu0 0
      %311 = vmatpush2.bf16.msra.mxu0 0
      %312 = vmatprep.subr.bf16.mxu0 0
      %313 = vmatpush2.bf16.msra.mxu0 0
      %314 = vmatprep.mubr.bf16.mxu0 0
      %315 = vmatmul.mubr.bf16.gmra.mxu0 %v226
      %v316 = vpop.f32.mrf.mxu0
      %v317 = vadd.f32 0.0, %v316
      %v318 = vpop.f32.mrf.mxu0
      %v319 = vpop.f32.mrf.mxu0
      %v320 = vadd.f32 0.0, %v319
      %v321 = vpop.f32.mrf.mxu0
      %322 = vmatprep.mubr.bf16.mxu0 0
      %323 = vmatmul.mubr.bf16.gmra.mxu0 %v227
      %v324 = vpop.f32.mrf.mxu0
      %v325 = vadd.f32 0.0, %v324
      %v326 = vpop.f32.mrf.mxu0
      %v327 = vpop.f32.mrf.mxu0
      %v328 = vadd.f32 0.0, %v327
      %v329 = vpop.f32.mrf.mxu0
      %330 = vmatprep.mubr.bf16.mxu0 0
      %331 = vmatmul.mubr.bf16.gmra.mxu0 %v228
      %v332 = vpop.f32.mrf.mxu0
      %v333 = vadd.f32 0.0, %v332
      %v334 = vpop.f32.mrf.mxu0
      %v335 = vpop.f32.mrf.mxu0
      %v336 = vadd.f32 0.0, %v335
      %v337 = vpop.f32.mrf.mxu0
      %338 = vmatprep.mubr.bf16.mxu0 0
      %339 = vmatmul.mubr.bf16.gmra.mxu0 %v229
      %v340 = vpop.f32.mrf.mxu0
      %v341 = vadd.f32 0.0, %v340
      %v342 = vpop.f32.mrf.mxu0
      %v343 = vpop.f32.mrf.mxu0
      %v344 = vadd.f32 0.0, %v343
      %v345 = vpop.f32.mrf.mxu0
      %346 = vdwg.mxu0
      %v347 = vpack.c.bf16 %v320, %v317
      %v348 = vpack.c.bf16 %v328, %v325
      %v349 = vpack.c.bf16 %v336, %v333
      %v350 = vpack.c.bf16 %v344, %v341
      %v355 = vunpack.c.l.b16 %v347
      %v356 = vunpack.c.h.b16 %v347
      %v357 = vunpack.c.l.b16 %v348
      %v358 = vunpack.c.h.b16 %v348
      %v359 = vunpack.c.l.b16 %v349
      %v360 = vunpack.c.h.b16 %v349
      %v361 = vunpack.c.l.b16 %v350
      %v362 = vunpack.c.h.b16 %v350
      %v363 = vpack.c.b16 %v355, %v355
      %v364 = vpack.c.b16 %v356, %v356
      %v365 = vpack.c.b16 %v357, %v357
      %v366 = vpack.c.b16 %v358, %v358
      %v367 = vpack.c.b16 %v359, %v359
      %v368 = vpack.c.b16 %v360, %v360
      %v369 = vpack.c.b16 %v361, %v361
      %v370 = vpack.c.b16 %v362, %v362
      %379 = vst [vmem:[%s179] sm:$0xf] %v363
      %380 = vst [vmem:[%s179 + $0x4] sm:$0xf] %v364
      %381 = vst [vmem:[%s179 + $0x8] sm:$0xf] %v365
      %382 = vst [vmem:[%s179 + $0xc] sm:$0xf] %v366
      %383 = vst [vmem:[%s179 + $0x10] sm:$0xf] %v367
      %384 = vst [vmem:[%s179 + $0x14] sm:$0xf] %v368
      %385 = vst [vmem:[%s179 + $0x18] sm:$0xf] %v369
      %386 = vst [vmem:[%s179 + $0x1c] sm:$0xf] %v370
      %v387 = vadd.f32 %v317, %v320
      %v388 = vadd.f32 %v387, %v325
      %v389 = vadd.f32 %v388, %v328
      %v390 = vadd.f32 %v389, %v333
      %v391 = vadd.f32 %v390, %v336
      %v392 = vadd.f32 %v391, %v341
      %v393 = vadd.f32 %v392, %v344
      %v394 = vrot.slane %v393, 4
      %v395 = vadd.f32 %v393, %v394
      %v396 = vrot.slane %v395, 2
      %v397 = vadd.f32 %v395, %v396
      %v398 = vrot.slane %v397, 1
      %v399 = vadd.f32 %v397, %v398
      %v400 = vmul.f32 %v317, %v317
      %v401 = vmul.f32 %v320, %v320
      %v402 = vmul.f32 %v325, %v325
      %v403 = vmul.f32 %v328, %v328
      %v404 = vmul.f32 %v333, %v333
      %v405 = vmul.f32 %v336, %v336
      %v406 = vmul.f32 %v341, %v341
      %v407 = vmul.f32 %v344, %v344
      %v408 = vadd.f32 %v400, %v401
      %v409 = vadd.f32 %v408, %v402
      %v410 = vadd.f32 %v409, %v403
      %v411 = vadd.f32 %v410, %v404
      %v412 = vadd.f32 %v411, %v405
      %v413 = vadd.f32 %v412, %v406
      %v414 = vadd.f32 %v413, %v407
      %v415 = vrot.slane %v414, 4
      %v416 = vadd.f32 %v414, %v415
      %v417 = vrot.slane %v416, 2
      %v418 = vadd.f32 %v416, %v417
      %v419 = vrot.slane %v418, 1
      %v420 = vadd.f32 %v418, %v419
      %vm421 = vcmask 1040384
      %v422 = vsel %vm421, %v399, %v420
      %vm423 = vcmask 1041408
      %v424 = vsel %vm423, %v422, 0.0
      %425 = vst [vmem:[%s184] sm:$0xff] %v424
      %s426 = smul.u32 8, %s15
      %p427 = scmp.lt.s32.totalorder %s426, 15
      %s428 = scalar_select %p427, %s426, 15
      %s429 = smul.addr %s428, 4
      %s430 = scalar_lea.vmem %s2, %s429
      %p431 = scmp.lt.s32.totalorder %s15, 1
      %s432 = scalar_select %p431, %s15, 1
      %s433 = smul.addr %s432, 8
      %s434 = scalar_lea.vmem %s3, %s433
      // Predicated region
      $region29: #{resnet_block_forward.6} parent=27 // pred_check
        %p435 = pneg %p80
      $region30: #{resnet_block_forward.6} parent=27 // pred_check_branch
        %437 = sbr.rel (%p435) target = $region32
      $region31: #{resnet_block_forward.6} parent=27 // pred_region
        %s438 = smul.u32 8, %s15
      $region32: #{resnet_block_forward.6} parent=27 // pred_fallthru
        _
      // Predicated region
      $region33: #{resnet_block_forward.6} parent=27 // pred_check
        %p439 = pneg %p106
      $region34: #{resnet_block_forward.6} parent=27 // pred_check_branch
        %441 = sbr.rel (%p439) target = $region36
      $region35: #{resnet_block_forward.6} parent=27 // pred_region
        _
      $region36: #{resnet_block_forward.6} parent=27 // pred_fallthru
        _
    $region28: #{resnet_block_forward.6} parent=5 // pred_fallthru
      _
    %p442 = scmp.le.s32.totalorder 2, %s10
    // Predicated region
    $region37: #{resnet_block_forward.6} parent=5 // pred_check
      %p443 = pneg %p442
    $region38: #{resnet_block_forward.6} parent=5 // pred_check_branch
      %445 = sbr.rel (%p443) target = $region40
    $region39: #{resnet_block_forward.6} parent=5 // pred_region
      %s446 = ssub.s32 %s10, 2
      // Predicated region
      $region41: #{resnet_block_forward.6} parent=39 // pred_check
        %p447 = pneg %p86
      $region42: #{resnet_block_forward.6} parent=39 // pred_check_branch
        %449 = sbr.rel (%p447) target = $region44
      $region43: #{resnet_block_forward.6} parent=39 // pred_region
        %s450 = smul.u32 8, %s16
        %p451 = scmp.lt.s32.totalorder %s450, 15
        %s452 = scalar_select %p451, %s450, 15
        %s453 = smul.addr %s452, 4
        %s454 = scalar_lea.vmem %s2, %s453
      $region44: #{resnet_block_forward.6} parent=39 // pred_fallthru
        _
      // Predicated region
      $region45: #{resnet_block_forward.6} parent=39 // pred_check
        %p455 = pneg %p112
      $region46: #{resnet_block_forward.6} parent=39 // pred_check_branch
        %457 = sbr.rel (%p455) target = $region48
      $region47: #{resnet_block_forward.6} parent=39 // pred_region
        %p458 = scmp.lt.s32.totalorder %s16, 1
        %s459 = scalar_select %p458, %s16, 1
        %s460 = smul.addr %s459, 8
        %s461 = scalar_lea.vmem %s3, %s460
      $region48: #{resnet_block_forward.6} parent=39 // pred_fallthru
        _
    $region40: #{resnet_block_forward.6} parent=5 // pred_fallthru
      _
  $region6: #{resnet_block_forward.6} parent=0 // loop_footer
    %s14 = sadd.s32 1, %s10
  $region7: #{resnet_block_forward.6} parent=0 // loop_footer_branch
    %9 = sbr.rel target = $region3
  $region8: #{resnet_block_forward.6} parent=0 // loop_exit
    _

// kernel: resnet_block_forward.7
$region0: #{resnet_block_forward.7}
  #allocation0 [shape = 'u32[]', space=smem, size = 0x4, offset = 0x4, fixed_abs, tag = 'smem constant byte address 0x4 - core index']
  #allocation1 [shape = 'u32[144,128]{1,0:T(1,128)}', space=vmem, size = 0x12000, scoped, tag = 'internal scratch']
  %s0 = inlined_call_operand.vmem [shape: bf16[128,128], index: 0, kind: input, shape index: {}]
  %s1 = inlined_call_operand.vmem [shape: bf16[128,256], index: 1, kind: input, shape index: {}]
  %s2 = inlined_call_operand.vmem [shape: f32[1,128], index: 2, kind: input, shape index: {}]
  %s3 = inlined_call_operand.vmem [shape: f32[1,128], index: 3, kind: input, shape index: {}]
  %s4 = inlined_call_operand.vmem [shape: f32[1,128], index: 4, kind: input, shape index: {}]
  %s5 = inlined_call_operand.vmem [shape: f32[1,128], index: 5, kind: input, shape index: {}]
  %s6 = inlined_call_operand.vmem [shape: f32[128,128], index: 6, kind: output, shape index: {}]
  %s7 = sld [smem:[#allocation0]]
  $region98: #{resnet_block_forward.7} parent=0
    _
  %s9 = ssub.s32 1, %s7
  %s10 = scalar_select 0, %s9, %s7
  $region1: #{resnet_block_forward.7} parent=0
    #allocation2 [shape = 'u8[32768]{0}', space=vmem, size = 0x8000, scoped, tag = 'input window, operand 1']
    loop: start=0, step=1, limit=4
    $region2: #{resnet_block_forward.7} parent=1 // loop_pre_header
      _
    $region3: #{resnet_block_forward.7} parent=1 // loop_header
      %s12 = sphi 0, %s16
      %p13 = scmp.ge.s32.totalorder %s12, 4
      %s22 = sphi 0, %s24
      %s25 = sphi 0, %s22
      %s26 = sphi 0, %s25
      %s42 = sphi 0, %s26
      %s48 = sphi 0, %s50
      %s51 = sphi 0, %s48
      %s52 = sphi 0, %s51
      %s68 = sphi 0, %s52
      %s72 = sphi 0, %s72
      %s74 = sphi 0, %s72
      %s75 = sphi 0, %s74
      %s89 = sphi 0, %s75
      %s93 = sphi 0, %s93
      %s95 = sphi 0, %s93
      %s96 = sphi 0, %s95
      %s110 = sphi 0, %s96
      %s114 = sphi 0, %s114
      %s116 = sphi 0, %s114
      %s117 = sphi 0, %s116
      %s131 = sphi 0, %s117
      %s135 = sphi 0, %s135
      %s137 = sphi 0, %s135
      %s138 = sphi 0, %s137
      %s152 = sphi 0, %s138
      %s158 = sphi 0, %s160
      %s161 = sphi 0, %s158
      %s162 = sphi 0, %s161
      %s178 = sphi 0, %s162
    $region4: #{resnet_block_forward.7} parent=1 // loop_header_branch
      %15 = sbr.rel (%p13) target = $region8
    $region5: #{resnet_block_forward.7} parent=1 // loop_body
      %s17 = ssub.s32 %s12, 1
      %s18 = ssub.s32 %s12, 2
      %s19 = sadd.s32 %s12, 1
      %s20 = ssub.s32 %s12, %s19
      %p21 = scmp.eq.s32.totalorder %s20, 0
      %s23 = sadd.s32 %s22, 1
      %s24 = scalar_select %p21, %s22, %s23
      %p27 = pneg %p21
      %p28 = scmp.eq.s32.totalorder %s12, 1
      %p29 = por %p27, %p28
      %p30 = scmp.ne.s32.totalorder %s22, %s25
      %p31 = scmp.eq.s32.totalorder %s12, 0
      %p32 = por %p30, %p31
      %p33 = scmp.ne.s32.totalorder %s22, %s25
      %p34 = scmp.eq.s32.totalorder %s17, 1
      %p35 = por %p33, %p34
      %p36 = scmp.ne.s32.totalorder %s25, %s26
      %p37 = scmp.eq.s32.totalorder %s17, 0
      %p38 = por %p36, %p37
      %p39 = scmp.ne.s32.totalorder %s25, %s26
      %p40 = scmp.eq.s32.totalorder %s18, 1
      %p41 = por %p39, %p40
      %p43 = scmp.ne.s32.totalorder %s26, %s42
      %p44 = scmp.eq.s32.totalorder %s18, 0
      %p45 = por %p43, %p44
      %s46 = ssub.s32 %s12, %s19
      %p47 = scmp.eq.s32.totalorder %s46, 0
      %s49 = sadd.s32 %s48, 1
      %s50 = scalar_select %p47, %s48, %s49
      %p53 = pneg %p47
      %p54 = scmp.eq.s32.totalorder %s12, 1
      %p55 = por %p53, %p54
      %p56 = scmp.ne.s32.totalorder %s48, %s51
      %p57 = scmp.eq.s32.totalorder %s12, 0
      %p58 = por %p56, %p57
      %p59 = scmp.ne.s32.totalorder %s48, %s51
      %p60 = scmp.eq.s32.totalorder %s17, 1
      %p61 = por %p59, %p60
      %p62 = scmp.ne.s32.totalorder %s51, %s52
      %p63 = scmp.eq.s32.totalorder %s17, 0
      %p64 = por %p62, %p63
      %p65 = scmp.ne.s32.totalorder %s51, %s52
      %p66 = scmp.eq.s32.totalorder %s18, 1
      %p67 = por %p65, %p66
      %p69 = scmp.ne.s32.totalorder %s52, %s68
      %p70 = scmp.eq.s32.totalorder %s18, 0
      %p71 = por %p69, %p70
      %s73 = sadd.s32 %s72, 1
      %p76 = scmp.eq.s32.totalorder %s12, 1
      %p77 = scmp.ne.s32.totalorder %s72, %s74
      %p78 = scmp.eq.s32.totalorder %s12, 0
      %p79 = por %p77, %p78
      %p80 = scmp.ne.s32.totalorder %s72, %s74
      %p81 = scmp.eq.s32.totalorder %s17, 1
      %p82 = por %p80, %p81
      %p83 = scmp.ne.s32.totalorder %s74, %s75
      %p84 = scmp.eq.s32.totalorder %s17, 0
      %p85 = por %p83, %p84
      %p86 = scmp.ne.s32.totalorder %s74, %s75
      %p87 = scmp.eq.s32.totalorder %s18, 1
      %p88 = por %p86, %p87
      %p90 = scmp.ne.s32.totalorder %s75, %s89
      %p91 = scmp.eq.s32.totalorder %s18, 0
      %p92 = por %p90, %p91
      %s94 = sadd.s32 %s93, 1
      %p97 = scmp.eq.s32.totalorder %s12, 1
      %p98 = scmp.ne.s32.totalorder %s93, %s95
      %p99 = scmp.eq.s32.totalorder %s12, 0
      %p100 = por %p98, %p99
      %p101 = scmp.ne.s32.totalorder %s93, %s95
      %p102 = scmp.eq.s32.totalorder %s17, 1
      %p103 = por %p101, %p102
      %p104 = scmp.ne.s32.totalorder %s95, %s96
      %p105 = scmp.eq.s32.totalorder %s17, 0
      %p106 = por %p104, %p105
      %p107 = scmp.ne.s32.totalorder %s95, %s96
      %p108 = scmp.eq.s32.totalorder %s18, 1
      %p109 = por %p107, %p108
      %p111 = scmp.ne.s32.totalorder %s96, %s110
      %p112 = scmp.eq.s32.totalorder %s18, 0
      %p113 = por %p111, %p112
      %s115 = sadd.s32 %s114, 1
      %p118 = scmp.eq.s32.totalorder %s12, 1
      %p119 = scmp.ne.s32.totalorder %s114, %s116
      %p120 = scmp.eq.s32.totalorder %s12, 0
      %p121 = por %p119, %p120
      %p122 = scmp.ne.s32.totalorder %s114, %s116
      %p123 = scmp.eq.s32.totalorder %s17, 1
      %p124 = por %p122, %p123
      %p125 = scmp.ne.s32.totalorder %s116, %s117
      %p126 = scmp.eq.s32.totalorder %s17, 0
      %p127 = por %p125, %p126
      %p128 = scmp.ne.s32.totalorder %s116, %s117
      %p129 = scmp.eq.s32.totalorder %s18, 1
      %p130 = por %p128, %p129
      %p132 = scmp.ne.s32.totalorder %s117, %s131
      %p133 = scmp.eq.s32.totalorder %s18, 0
      %p134 = por %p132, %p133
      %s136 = sadd.s32 %s135, 1
      %p139 = scmp.eq.s32.totalorder %s12, 1
      %p140 = scmp.ne.s32.totalorder %s135, %s137
      %p141 = scmp.eq.s32.totalorder %s12, 0
      %p142 = por %p140, %p141
      %p143 = scmp.ne.s32.totalorder %s135, %s137
      %p144 = scmp.eq.s32.totalorder %s17, 1
      %p145 = por %p143, %p144
      %p146 = scmp.ne.s32.totalorder %s137, %s138
      %p147 = scmp.eq.s32.totalorder %s17, 0
      %p148 = por %p146, %p147
      %p149 = scmp.ne.s32.totalorder %s137, %s138
      %p150 = scmp.eq.s32.totalorder %s18, 1
      %p151 = por %p149, %p150
      %p153 = scmp.ne.s32.totalorder %s138, %s152
      %p154 = scmp.eq.s32.totalorder %s18, 0
      %p155 = por %p153, %p154
      %s156 = ssub.s32 %s12, %s19
      %p157 = scmp.eq.s32.totalorder %s156, 0
      %s159 = sadd.s32 %s158, 1
      %s160 = scalar_select %p157, %s158, %s159
      %p163 = pneg %p157
      %p164 = scmp.eq.s32.totalorder %s12, 1
      %p165 = por %p163, %p164
      %p166 = scmp.ne.s32.totalorder %s158, %s161
      %p167 = scmp.eq.s32.totalorder %s12, 0
      %p168 = por %p166, %p167
      %p169 = scmp.ne.s32.totalorder %s158, %s161
      %p170 = scmp.eq.s32.totalorder %s17, 1
      %p171 = por %p169, %p170
      %p172 = scmp.ne.s32.totalorder %s161, %s162
      %p173 = scmp.eq.s32.totalorder %s17, 0
      %p174 = por %p172, %p173
      %p175 = scmp.ne.s32.totalorder %s161, %s162
      %p176 = scmp.eq.s32.totalorder %s18, 1
      %p177 = por %p175, %p176
      %p179 = scmp.ne.s32.totalorder %s162, %s178
      %p180 = scmp.eq.s32.totalorder %s18, 0
      %p181 = por %p179, %p180
      %p182 = scmp.le.s32.totalorder 1, %s12
      %p183 = scmp.lt.s32.totalorder %s12, 3
      %p184 = pnand %p182, %p183
      %p185 = pneg %p184
      // Predicated region
      $region9: #{resnet_block_forward.7} parent=5 // pred_check
        _
      $region10: #{resnet_block_forward.7} parent=5 // pred_check_branch
        %187 = sbr.rel (%p184) target = $region12
      $region11: #{resnet_block_forward.7} parent=5 // pred_region
        %s188 = ssub.s32 %s12, 1
        // Predicated region
        $region13: #{resnet_block_forward.7} parent=11 // pred_check
          %p189 = pneg %p85
        $region14: #{resnet_block_forward.7} parent=11 // pred_check_branch
          %191 = sbr.rel (%p189) target = $region16
        $region15: #{resnet_block_forward.7} parent=11 // pred_region
          _
        $region16: #{resnet_block_forward.7} parent=11 // pred_fallthru
          _
        // Predicated region
        $region17: #{resnet_block_forward.7} parent=11 // pred_check
          %p192 = pneg %p106
        $region18: #{resnet_block_forward.7} parent=11 // pred_check_branch
          %194 = sbr.rel (%p192) target = $region20
        $region19: #{resnet_block_forward.7} parent=11 // pred_region
          _
        $region20: #{resnet_block_forward.7} parent=11 // pred_fallthru
          _
        // Predicated region
        $region21: #{resnet_block_forward.7} parent=11 // pred_check
          %p195 = pneg %p127
        $region22: #{resnet_block_forward.7} parent=11 // pred_check_branch
          %197 = sbr.rel (%p195) target = $region24
        $region23: #{resnet_block_forward.7} parent=11 // pred_region
          _
        $region24: #{resnet_block_forward.7} parent=11 // pred_fallthru
          _
        // Predicated region
        $region25: #{resnet_block_forward.7} parent=11 // pred_check
          %p198 = pneg %p148
        $region26: #{resnet_block_forward.7} parent=11 // pred_check_branch
          %200 = sbr.rel (%p198) target = $region28
        $region27: #{resnet_block_forward.7} parent=11 // pred_region
          _
        $region28: #{resnet_block_forward.7} parent=11 // pred_fallthru
          _
      $region12: #{resnet_block_forward.7} parent=5 // pred_fallthru
        _
      %p201 = scmp.lt.s32.totalorder %s12, 2
      // Predicated region
      $region29: #{resnet_block_forward.7} parent=5 // pred_check
        %p202 = pneg %p201
      $region30: #{resnet_block_forward.7} parent=5 // pred_check_branch
        %204 = sbr.rel (%p202) target = $region32
      $region31: #{resnet_block_forward.7} parent=5 // pred_region
        // Predicated region
        $region33: #{resnet_block_forward.7} parent=31 // pred_check
          %p205 = pneg %p32
        $region34: #{resnet_block_forward.7} parent=31 // pred_check_branch
          %207 = sbr.rel (%p205) target = $region36
        $region35: #{resnet_block_forward.7} parent=31 // pred_region
          %s208 = smul.u32 8, %s12
          %p209 = scmp.lt.s32.totalorder %s208, 15
          %s210 = scalar_select %p209, %s208, 15
          %s211 = smul.addr %s210, 4
          %s212 = scalar_lea.vmem %s0, %s211
          %s213 = smul.u32 8, %s12
        $region36: #{resnet_block_forward.7} parent=31 // pred_fallthru
          _
        // Predicated region
        $region37: #{resnet_block_forward.7} parent=31 // pred_check
          %p214 = pneg %p58
        $region38: #{resnet_block_forward.7} parent=31 // pred_check_branch
          %216 = sbr.rel (%p214) target = $region40
        $region39: #{resnet_block_forward.7} parent=31 // pred_region
          %s217 = sand.u32 %s48, 1
          %s218 = sand.u32 %s48, 1
          %s219 = smul.addr %s218, 32
          %s220 = scalar_lea.vmem [#allocation2], %s219
          %s221 = smul.u32 8, %s12
          %s222 = smul.addr %s221, 2
          %s223 = sadd.s32 1, %s222
          %s224 = smul.addr %s223, 4
          %s225 = scalar_lea.vmem %s1, %s224
          // Predicated region
          $region41: #{resnet_block_forward.7} parent=39 // pred_check
            _
          $region42: #{resnet_block_forward.7} parent=39 // pred_check_branch
            %227 = sbr.rel (0) target = $region44
          $region43: #{resnet_block_forward.7} parent=39 // pred_region
            // Predicated region
            $region45: #{resnet_block_forward.7} parent=43 // pred_check
              _
            $region46: #{resnet_block_forward.7} parent=43 // pred_check_branch
              %229 = sbr.rel target = $region48
            $region47: #{resnet_block_forward.7} parent=43 // pred_region
              // Predicated region
              $region60: #{resnet_block_forward.7} parent=47 // pred_check
                _
              $region61: #{resnet_block_forward.7} parent=47 // pred_check_branch
                %259 = sbr.rel (0) target = $region63
              $region62: #{resnet_block_forward.7} parent=47 // pred_region
                loop: start=0, step=1, limit=1
                $region64: #{resnet_block_forward.7} parent=62 // loop_pre_header
                  _
                $region65: #{resnet_block_forward.7} parent=62 // loop_header
                  %s261 = sphi 0, %s265
                  %p262 = scmp.ge.s32.totalorder %s261, 1
                  %s266 = sphi %s225, %s225
                  %s267 = sphi %s220, %s220
                $region66: #{resnet_block_forward.7} parent=62 // loop_header_branch
                  %264 = sbr.rel (%p262) target = $region70
                $region67: #{resnet_block_forward.7} parent=62 // loop_body
                  _
                $region68: #{resnet_block_forward.7} parent=62 // loop_footer
                  %s265 = sadd.s32 1, %s261
                $region69: #{resnet_block_forward.7} parent=62 // loop_footer_branch
                  %260 = sbr.rel target = $region65
                $region70: #{resnet_block_forward.7} parent=62 // loop_exit
                  _
                %s269 = ssub.s32 16, 1
                loop: start=0, step=1, limit=1
                $region71: #{resnet_block_forward.7} parent=62 // loop_pre_header
                  _
                $region72: #{resnet_block_forward.7} parent=62 // loop_header
                  %s271 = sphi 0, %s275
                  %p272 = scmp.ge.s32.totalorder %s271, 1
                  %s276 = sphi %s225, %s225
                  %s277 = sphi %s220, %s220
                $region73: #{resnet_block_forward.7} parent=62 // loop_header_branch
                  %274 = sbr.rel (%p272) target = $region77
                $region74: #{resnet_block_forward.7} parent=62 // loop_body
                  %v278 = vld [vmem:[%s276] sm:%s269]
                  %279 = vst [vmem:[%s277] sm:%s269] %v278
                  %v280 = vld [vmem:[%s276 + $0x8] sm:%s269]
                  %281 = vst [vmem:[%s277 + $0x4] sm:%s269] %v280
                  %v282 = vld [vmem:[%s276 + $0x10] sm:%s269]
                  %283 = vst [vmem:[%s277 + $0x8] sm:%s269] %v282
                  %v284 = vld [vmem:[%s276 + $0x18] sm:%s269]
                  %285 = vst [vmem:[%s277 + $0xc] sm:%s269] %v284
                  %v286 = vld [vmem:[%s276 + $0x20] sm:%s269]
                  %287 = vst [vmem:[%s277 + $0x10] sm:%s269] %v286
                  %v288 = vld [vmem:[%s276 + $0x28] sm:%s269]
                  %289 = vst [vmem:[%s277 + $0x14] sm:%s269] %v288
                  %v290 = vld [vmem:[%s276 + $0x30] sm:%s269]
                  %291 = vst [vmem:[%s277 + $0x18] sm:%s269] %v290
                  %v292 = vld [vmem:[%s276 + $0x38] sm:%s269]
                  %293 = vst [vmem:[%s277 + $0x1c] sm:%s269] %v292
                $region75: #{resnet_block_forward.7} parent=62 // loop_footer
                  %s275 = sadd.s32 1, %s271
                $region76: #{resnet_block_forward.7} parent=62 // loop_footer_branch
                  %270 = sbr.rel target = $region72
                $region77: #{resnet_block_forward.7} parent=62 // loop_exit
                  _
              $region63: #{resnet_block_forward.7} parent=47 // pred_fallthru
                _
            $region48: #{resnet_block_forward.7} parent=43 // pred_fallthru
              _
            // Predicated region
            $region49: #{resnet_block_forward.7} parent=43 // pred_check
              _
            $region50: #{resnet_block_forward.7} parent=43 // pred_check_branch
              %231 = sbr.rel (0) target = $region52
            $region51: #{resnet_block_forward.7} parent=43 // pred_region
              %s233 = ssub.s32 16, 1
              loop: start=0, step=1, limit=1
              $region53: #{resnet_block_forward.7} parent=51 // loop_pre_header
                _
              $region54: #{resnet_block_forward.7} parent=51 // loop_header
                %s235 = sphi 0, %s239
                %p236 = scmp.ge.s32.totalorder %s235, 1
                %s240 = sphi %s225, %s225
                %s241 = sphi %s220, %s220
              $region55: #{resnet_block_forward.7} parent=51 // loop_header_branch
                %238 = sbr.rel (%p236) target = $region59
              $region56: #{resnet_block_forward.7} parent=51 // loop_body
                %v242 = vld [vmem:[%s240] sm:%s233]
                %243 = vst [vmem:[%s241] sm:%s233] %v242
                %v244 = vld [vmem:[%s240 + $0x8] sm:%s233]
                %245 = vst [vmem:[%s241 + $0x4] sm:%s233] %v244
                %v246 = vld [vmem:[%s240 + $0x10] sm:%s233]
                %247 = vst [vmem:[%s241 + $0x8] sm:%s233] %v246
                %v248 = vld [vmem:[%s240 + $0x18] sm:%s233]
                %249 = vst [vmem:[%s241 + $0xc] sm:%s233] %v248
                %v250 = vld [vmem:[%s240 + $0x20] sm:%s233]
                %251 = vst [vmem:[%s241 + $0x10] sm:%s233] %v250
                %v252 = vld [vmem:[%s240 + $0x28] sm:%s233]
                %253 = vst [vmem:[%s241 + $0x14] sm:%s233] %v252
                %v254 = vld [vmem:[%s240 + $0x30] sm:%s233]
                %255 = vst [vmem:[%s241 + $0x18] sm:%s233] %v254
                %v256 = vld [vmem:[%s240 + $0x38] sm:%s233]
                %257 = vst [vmem:[%s241 + $0x1c] sm:%s233] %v256
              $region57: #{resnet_block_forward.7} parent=51 // loop_footer
                %s239 = sadd.s32 1, %s235
              $region58: #{resnet_block_forward.7} parent=51 // loop_footer_branch
                %234 = sbr.rel target = $region54
              $region59: #{resnet_block_forward.7} parent=51 // loop_exit
                _
            $region52: #{resnet_block_forward.7} parent=43 // pred_fallthru
              _
          $region44: #{resnet_block_forward.7} parent=39 // pred_fallthru
            _
          %294 = vnop
        $region40: #{resnet_block_forward.7} parent=31 // pred_fallthru
          _
      $region32: #{resnet_block_forward.7} parent=5 // pred_fallthru
        _
      %p295 = scmp.le.s32.totalorder 1, %s12
      %p296 = scmp.lt.s32.totalorder %s12, 3
      %p297 = pnand %p295, %p296
      %p298 = pneg %p297
      // Predicated region
      $region78: #{resnet_block_forward.7} parent=5 // pred_check
        _
      $region79: #{resnet_block_forward.7} parent=5 // pred_check_branch
        %300 = sbr.rel (%p297) target = $region81
      $region80: #{resnet_block_forward.7} parent=5 // pred_region
        %s301 = ssub.s32 %s12, 1
        %s302 = sand.u32 %s51, 1
        %s303 = sand.u32 %s51, 1
        %s304 = smul.addr %s303, 32
        %s305 = scalar_lea.vmem [#allocation2], %s304
        // Predicated region
        $region82: #{resnet_block_forward.7} parent=80 // pred_check
          %p306 = pneg %p64
        $region83: #{resnet_block_forward.7} parent=80 // pred_check_branch
          %308 = sbr.rel (%p306) target = $region85
        $region84: #{resnet_block_forward.7} parent=80 // pred_region
          _
        $region85: #{resnet_block_forward.7} parent=80 // pred_fallthru
          _
        %s309 = smul.u32 8, %s17
        %p310 = scmp.lt.s32.totalorder %s309, 15
        %s311 = scalar_select %p310, %s309, 15
        %s312 = smul.addr %s311, 4
        %s313 = scalar_lea.vmem %s0, %s312
        %p314 = pneg %p38
        %p315 = pneg %p35
        %s316 = sand.u32 %s51, 1
        %s317 = sand.u32 %s51, 1
        %s318 = smul.addr %s317, 32
        %s319 = scalar_lea.vmem [#allocation2], %s318
        %p320 = pneg %p64
        %p321 = pneg %p61
        %p322 = pneg %p85
        %p323 = pneg %p82
        %p324 = pneg %p106
        %p325 = pneg %p103
        %p326 = pneg %p127
        %p327 = pneg %p124
        %p328 = pneg %p148
        %p329 = pneg %p145
        %p330 = pneg %p174
        %p331 = pneg %p171
        %s332 = smul.u32 8, %s17
        %p333 = scmp.lt.s32.totalorder %s332, 15
        %s334 = scalar_select %p333, %s332, 15
        %s335 = smul.addr %s334, 8
        %s336 = scalar_lea.vmem %s6, %s335
        %s337 = smul.u32 8, %s17
        %p338 = scmp.lt.s32.totalorder %s337, 15
        %s339 = scalar_select %p338, %s337, 15
        %s340 = smul.addr %s339, 4
        %s341 = scalar_lea.vmem %s0, %s340
        %s342 = smul.u32 8, %s17
        %s343 = smul.u32 8, %s17
        %s344 = smul.u32 8, %s17
        %p345 = scmp.lt.s32.totalorder %s344, 15
        %s346 = scalar_select %p345, %s344, 15
        %s347 = smul.addr %s346, 8
        %s348 = scalar_lea.vmem %s6, %s347
        %s349 = smul.u32 8, %s17
        %v350 = vld [vmem:[%s341] sm:$0xf]
        %v351 = vld [vmem:[%s341 + $0x4] sm:$0xf]
        %v352 = vld [vmem:[%s341 + $0x8] sm:$0xf]
        %v353 = vld [vmem:[%s341 + $0xc] sm:$0xf]
        %v354 = vld [vmem:[%s341 + $0x10] sm:$0xf]
        %v355 = vld [vmem:[%s341 + $0x14] sm:$0xf]
        %v356 = vld [vmem:[%s341 + $0x18] sm:$0xf]
        %v357 = vld [vmem:[%s341 + $0x1c] sm:$0xf]
        %v358 = vunpack.c.l.bf16 %v350
        %v359 = vunpack.c.l.bf16 %v351
        %v360 = vunpack.c.l.bf16 %v352
        %v361 = vunpack.c.l.bf16 %v353
        %v362 = vunpack.c.l.bf16 %v354
        %v363 = vunpack.c.l.bf16 %v355
        %v364 = vunpack.c.l.bf16 %v356
        %v365 = vunpack.c.l.bf16 %v357
        %v366 = vld [vmem:[%s2] sm:$0x1]
        %v368 = vlaneseq
        %v369 = vshrl.u32 %v368, 7
        %v370 = vsub.s32 0, %v369
        %v371 = vrot.slane %v366, %v370
        %v373 = vmul.f32 %v358, %v371
        %v374 = vmul.f32 %v359, %v371
        %v375 = vmul.f32 %v360, %v371
        %v376 = vmul.f32 %v361, %v371
        %v377 = vmul.f32 %v362, %v371
        %v378 = vmul.f32 %v363, %v371
        %v379 = vmul.f32 %v364, %v371
        %v380 = vmul.f32 %v365, %v371
        %v381 = vld [vmem:[%s3] sm:$0x1]
        %v383 = vlaneseq
        %v384 = vshrl.u32 %v383, 7
        %v385 = vsub.s32 0, %v384
        %v386 = vrot.slane %v381, %v385
        %v388 = vadd.f32 %v373, %v386
        %v389 = vadd.f32 %v374, %v386
        %v390 = vadd.f32 %v375, %v386
        %v391 = vadd.f32 %v376, %v386
        %v392 = vadd.f32 %v377, %v386
        %v393 = vadd.f32 %v378, %v386
        %v394 = vadd.f32 %v379, %v386
        %v395 = vadd.f32 %v380, %v386
        %v396 = vld [vmem:[%s305] sm:$0xf]
        %v397 = vld [vmem:[%s305 + $0x4] sm:$0xf]
        %v398 = vld [vmem:[%s305 + $0x8] sm:$0xf]
        %v399 = vld [vmem:[%s305 + $0xc] sm:$0xf]
        %v400 = vld [vmem:[%s305 + $0x10] sm:$0xf]
        %v401 = vld [vmem:[%s305 + $0x14] sm:$0xf]
        %v402 = vld [vmem:[%s305 + $0x18] sm:$0xf]
        %v403 = vld [vmem:[%s305 + $0x1c] sm:$0xf]
        %v404 = vunpack.c.l.bf16 %v396
        %v405 = vunpack.c.l.bf16 %v397
        %v406 = vunpack.c.l.bf16 %v398
        %v407 = vunpack.c.l.bf16 %v399
        %v408 = vunpack.c.l.bf16 %v400
        %v409 = vunpack.c.l.bf16 %v401
        %v410 = vunpack.c.l.bf16 %v402
        %v411 = vunpack.c.l.bf16 %v403
        %v412 = vld [vmem:[%s4] sm:$0x1]
        %v414 = vlaneseq
        %v415 = vshrl.u32 %v414, 7
        %v416 = vsub.s32 0, %v415
        %v417 = vrot.slane %v412, %v416
        %v419 = vmul.f32 %v404, %v417
        %v420 = vmul.f32 %v405, %v417
        %v421 = vmul.f32 %v406, %v417
        %v422 = vmul.f32 %v407, %v417
        %v423 = vmul.f32 %v408, %v417
        %v424 = vmul.f32 %v409, %v417
        %v425 = vmul.f32 %v410, %v417
        %v426 = vmul.f32 %v411, %v417
        %v427 = vadd.f32 %v388, %v419
        %v428 = vadd.f32 %v389, %v420
        %v429 = vadd.f32 %v390, %v421
        %v430 = vadd.f32 %v391, %v422
        %v431 = vadd.f32 %v392, %v423
        %v432 = vadd.f32 %v393, %v424
        %v433 = vadd.f32 %v394, %v425
        %v434 = vadd.f32 %v395, %v426
        %v435 = vld [vmem:[%s5] sm:$0x1]
        %v437 = vlaneseq
        %v438 = vshrl.u32 %v437, 7
        %v439 = vsub.s32 0, %v438
        %v440 = vrot.slane %v435, %v439
        %v442 = vadd.f32 %v427, %v440
        %v443 = vadd.f32 %v428, %v440
        %v444 = vadd.f32 %v429, %v440
        %v445 = vadd.f32 %v430, %v440
        %v446 = vadd.f32 %v431, %v440
        %v447 = vadd.f32 %v432, %v440
        %v448 = vadd.f32 %v433, %v440
        %v449 = vadd.f32 %v434, %v440
        %v450 = vmax.f32 %v442, 0.0
        %v451 = vmax.f32 %v443, 0.0
        %v452 = vmax.f32 %v444, 0.0
        %v453 = vmax.f32 %v445, 0.0
        %v454 = vmax.f32 %v446, 0.0
        %v455 = vmax.f32 %v447, 0.0
        %v456 = vmax.f32 %v448, 0.0
        %v457 = vmax.f32 %v449, 0.0
        %458 = vst [vmem:[%s348] sm:$0xff] %v450
        %459 = vst [vmem:[%s348 + $0x8] sm:$0xff] %v451
        %460 = vst [vmem:[%s348 + $0x10] sm:$0xff] %v452
        %461 = vst [vmem:[%s348 + $0x18] sm:$0xff] %v453
        %462 = vst [vmem:[%s348 + $0x20] sm:$0xff] %v454
        %463 = vst [vmem:[%s348 + $0x28] sm:$0xff] %v455
        %464 = vst [vmem:[%s348 + $0x30] sm:$0xff] %v456
        %465 = vst [vmem:[%s348 + $0x38] sm:$0xff] %v457
        %s466 = smul.u32 8, %s17
        %p467 = scmp.lt.s32.totalorder %s466, 15
        %s468 = scalar_select %p467, %s466, 15
        %s469 = smul.addr %s468, 8
        %s470 = scalar_lea.vmem %s6, %s469
        // Predicated region
        $region86: #{resnet_block_forward.7} parent=80 // pred_check
          %p471 = pneg %p171
        $region87: #{resnet_block_forward.7} parent=80 // pred_check_branch
          %473 = sbr.rel (%p471) target = $region89
        $region88: #{resnet_block_forward.7} parent=80 // pred_region
          %s474 = smul.u32 8, %s17
        $region89: #{resnet_block_forward.7} parent=80 // pred_fallthru
          _
      $region81: #{resnet_block_forward.7} parent=5 // pred_fallthru
        _
      %p475 = scmp.le.s32.totalorder 2, %s12
      // Predicated region
      $region90: #{resnet_block_forward.7} parent=5 // pred_check
        %p476 = pneg %p475
      $region91: #{resnet_block_forward.7} parent=5 // pred_check_branch
        %478 = sbr.rel (%p476) target = $region93
      $region92: #{resnet_block_forward.7} parent=5 // pred_region
        %s479 = ssub.s32 %s12, 2
        // Predicated region
        $region94: #{resnet_block_forward.7} parent=92 // pred_check
          %p480 = pneg %p177
        $region95: #{resnet_block_forward.7} parent=92 // pred_check_branch
          %482 = sbr.rel (%p480) target = $region97
        $region96: #{resnet_block_forward.7} parent=92 // pred_region
          %s483 = smul.u32 8, %s18
          %p484 = scmp.lt.s32.totalorder %s483, 15
          %s485 = scalar_select %p484, %s483, 15
          %s486 = smul.addr %s485, 8
          %s487 = scalar_lea.vmem %s6, %s486
        $region97: #{resnet_block_forward.7} parent=92 // pred_fallthru
          _
      $region93: #{resnet_block_forward.7} parent=5 // pred_fallthru
        _
    $region6: #{resnet_block_forward.7} parent=1 // loop_footer
      %s16 = sadd.s32 1, %s12
    $region7: #{resnet_block_forward.7} parent=1 // loop_footer_branch
      %11 = sbr.rel target = $region3
    $region8: #{resnet_block_forward.7} parent=1 // loop_exit
      _

</llo_original>
